<compile_context>
chip_gen: v7x
topology: tpu7x:2x2x1
jax: 0.10.0
libtpu: 0.0.40
codegen_flags: <defaults>
</compile_context>

<pallas_src>
import functools

import jax
import jax.numpy as jnp
from jax import lax
from jax.experimental import pallas as pl
from jax.experimental.pallas import tpu as pltpu


# --------------------------------------------------------------------------
# Fused kernel.  Grid = (B, T): one t-slice of the volume per step; the
# sampling contraction + head run once per batch element at the last t step.
# --------------------------------------------------------------------------
def _mtr3_kernel(x_ref, u_ref,
                 bw1c_ref, bb1c_ref, bw2c_ref, bb2_ref,
                 ewT_ref, eb_ref,
                 hw1T_ref, hb1_ref, hw2T_ref, hb2_ref,
                 hw3T_ref, hb3_ref, lim_ref,
                 feat_ref, seg_ref, move_ref,
                 emb_ref,
                 *, H, W, T):
    f32 = jnp.float32
    ti = pl.program_id(1)
    C = bw1c_ref.shape[0]
    D = ewT_ref.shape[0]
    Q = u_ref.shape[1]

    # ---- backbone stand-in: per-voxel conv -> ReLU (feature) and
    #      conv -> sigmoid (segmentation); lane-dense [C, HW] / [1, HW] ----
    xr = x_ref[...]                                                  # [1, HW]
    feat_cp = jnp.maximum(bw1c_ref[...] * xr + bb1c_ref[...], 0.0)   # [C, HW]
    feat_ref[...] = feat_cp
    s = jnp.sum(feat_cp * bw2c_ref[...], axis=0, keepdims=True) + bb2_ref[...]
    seg_ref[...] = 1.0 / (1.0 + jnp.exp(-s))                         # [1, HW]

    # ---- vector_embedding pre-multiply (reassociated: emb_w applied before
    #      sampling).  C is tiny, so this is C VPU broadcast-FMAs producing a
    #      lane-dense [D, HW] slab, staged into the [T*D, HW] scratch so the
    #      sampling contraction can run as ONE merged MXU matmul. ----
    ewT = ewT_ref[...]                                               # [D, C]
    emb = ewT[:, 0:1] * feat_cp[0:1, :]
    for c in range(1, C):
        emb = emb + ewT[:, c:c + 1] * feat_cp[c:c + 1, :]            # [D, HW]
    row0 = pl.multiple_of(ti * D, D)
    emb_ref[pl.ds(row0, D), :] = emb

    # ---- last t-slice: separable trilinear grid_sample (zeros padding,
    #      align_corners=True), embedding bias/ReLU/mask, head, move store ----
    @pl.when(ti == T - 1)
    def _():
        u = u_ref[...]                                               # [4, Q]
        uw, uh, ut, xm = u[0:1], u[1:2], u[2:3], u[3:4]

        ih = lax.broadcasted_iota(jnp.int32, (H, Q), 0).astype(f32)
        iw = lax.broadcasted_iota(jnp.int32, (W, Q), 0).astype(f32)
        it = lax.broadcasted_iota(jnp.int32, (T, Q), 0).astype(f32)
        whT = jnp.maximum(1.0 - jnp.abs(ih - uh), 0.0)               # [H, Q]
        wwT = jnp.maximum(1.0 - jnp.abs(iw - uw), 0.0)               # [W, Q]
        wtT = jnp.maximum(1.0 - jnp.abs(it - ut), 0.0)               # [T, Q]
        # whw is identical for every t-slice; built once, Q stays on lanes.
        whwT = (whT[:, None, :] * wwT[None, :, :]).reshape(H * W, Q)

        # single merged sampling matmul: [T*D, HW] @ [HW, Q], K = HW
        M = jnp.dot(emb_ref[...], whwT, preferred_element_type=f32)  # [T*D, Q]
        acc = wtT[0:1, :] * M[0:D, :]
        for tt in range(1, T):
            acc = acc + wtT[tt:tt + 1, :] * M[tt * D:(tt + 1) * D, :]

        # finish vector_embedding: bias + ReLU + out-of-range mask
        vec = jnp.maximum(acc + eb_ref[...], 0.0)                    # [D, Q]
        vec = jnp.where(xm < 0.0, 0.0, vec)

        # head: 1x1 conv -> (folded BN) -> ReLU, x2, then conv; all in [*, Q]
        h = jnp.maximum(jnp.dot(hw1T_ref[...], vec,
                                preferred_element_type=f32) + hb1_ref[...], 0.0)
        h = jnp.maximum(jnp.dot(hw2T_ref[...], h,
                                preferred_element_type=f32) + hb2_ref[...], 0.0)
        z = jnp.dot(hw3T_ref[...], h,
                    preferred_element_type=f32) + hb3_ref[...]        # [6, Q]
        # (2*sigmoid(z) - 1) * move_limit == tanh(z/2) * move_limit  (EUP)
        move_ref[...] = jnp.tanh(0.5 * z) * lim_ref[...]


def _fold_bn(w, b, gamma, beta, rmean, rvar, eps=1e-5):
    """Fold eval-mode BatchNorm into the preceding 1x1 conv (exact)."""
    s = gamma * jax.lax.rsqrt(rvar + eps)
    return w * s[None, :], b * s + beta - rmean * s


# --------------------------------------------------------------------------
# Full MTR3.forward
# --------------------------------------------------------------------------
@jax.jit
def mtr3_forward(params, inputs, point):
    f32 = jnp.float32
    B, _, T, H, W = inputs.shape
    C, D = params['emb_w'].shape
    N = point.shape[2]
    HW = H * W
    P = T * HW
    Q = T * N

    x_row = inputs.reshape(B, 1, P)

    # ---- grid coordinates, exactly as MTR3.feature_embedding builds them ----
    pt = point.astype(f32)
    y_norm = 2.0 * pt[..., 1] / H - 1.0            # normalized by feature.shape[-2]
    x_norm = 2.0 * pt[..., 0] / W - 1.0            # normalized by feature.shape[-1]
    t_norm = 2.0 * jnp.arange(T, dtype=f32) / T - 1.0
    t_norm = jnp.broadcast_to(t_norm[None, :, None], (B, T, N))
    # grid_sample maps grid[...,0]->W axis, grid[...,1]->H axis, grid[...,2]->T
    # with coord_take = (t_norm, y_norm, x_norm); align_corners=True un-normalize:
    u_w = (t_norm + 1.0) * 0.5 * (W - 1)
    u_h = (y_norm + 1.0) * 0.5 * (H - 1)
    u_t = (x_norm + 1.0) * 0.5 * (T - 1)
    # transposed layout [B, 4, Q]: rows (u_w, u_h, u_t, x_norm-mask), Q on lanes
    u = jnp.stack([u_w.reshape(B, Q), u_h.reshape(B, Q),
                   u_t.reshape(B, Q), x_norm.reshape(B, Q)], axis=1)

    # ---- backbone / embedding parameter layouts ----
    bw1c = params['bb_w1'].reshape(C, 1)
    bb1c = params['bb_b1'].reshape(C, 1)
    bw2c = params['bb_w2'].reshape(C, 1)
    bb2 = params['bb_b2'].reshape(1, 1)
    ewT = params['emb_w'].T                                          # [D, C]
    eb = params['emb_b'].reshape(D, 1)

    # ---- head: fold eval-mode BatchNorm into the 1x1 convs; [*, Q] layout ----
    hw1f, hb1f = _fold_bn(params['h_w1'], params['h_b1'], params['h_g1'],
                          params['h_be1'], params['h_rm1'], params['h_rv1'])
    hw2f, hb2f = _fold_bn(params['h_w2'], params['h_b2'], params['h_g2'],
                          params['h_be2'], params['h_rm2'], params['h_rv2'])
    hw1T = hw1f.T
    hb1 = hb1f.reshape(D, 1)
    hw2T = hw2f.T
    hb2 = hb2f.reshape(D, 1)
    # last conv replicated over the 3 move_limit slots: rows ordered (k, j)
    # k-major; move_limit applied by broadcast multiply.
    hw3T = jnp.tile(params['h_w3'].T, (3, 1))                        # [6, D]
    hb3 = jnp.tile(params['h_b3'], 3).reshape(6, 1)                  # [6, 1]
    lim = jnp.repeat(params['move_limit'], 2).reshape(6, 1)          # [6, 1]

    kern = functools.partial(_mtr3_kernel, H=H, W=W, T=T)
    c00 = lambda b, t: (0, 0)

    feat_out, seg_out, move_out = pl.pallas_call(
        kern,
        grid=(B, T),
        in_specs=[
            pl.BlockSpec((None, 1, HW), lambda b, t: (b, 0, t)),     # x t-slice
            pl.BlockSpec((None, 4, Q), lambda b, t: (b, 0, 0)),      # u (per b)
            pl.BlockSpec((C, 1), c00),                               # bw1c
            pl.BlockSpec((C, 1), c00),                               # bb1c
            pl.BlockSpec((C, 1), c00),                               # bw2c
            pl.BlockSpec((1, 1), c00),                               # bb2
            pl.BlockSpec((D, C), c00),                               # emb_w^T
            pl.BlockSpec((D, 1), c00),                               # emb_b
            pl.BlockSpec((D, D), c00),                               # head w1^T (BN folded)
            pl.BlockSpec((D, 1), c00),                               # head b1
            pl.BlockSpec((D, D), c00),                               # head w2^T (BN folded)
            pl.BlockSpec((D, 1), c00),                               # head b2
            pl.BlockSpec((6, D), c00),                               # head w3^T (tiled x3)
            pl.BlockSpec((6, 1), c00),                               # head b3 (tiled x3)
            pl.BlockSpec((6, 1), c00),                               # move_limit (repeated x2)
        ],
        out_specs=[
            pl.BlockSpec((None, C, HW), lambda b, t: (b, 0, t)),     # feature [B, C, P]
            pl.BlockSpec((None, 1, HW), lambda b, t: (b, 0, t)),     # seg     [B, 1, P]
            pl.BlockSpec((None, 6, Q), lambda b, t: (b, 0, 0)),      # move    [B, 6, Q]
        ],
        out_shape=[
            jax.ShapeDtypeStruct((B, C, P), f32),
            jax.ShapeDtypeStruct((B, 1, P), f32),
            jax.ShapeDtypeStruct((B, 6, Q), f32),
        ],
        scratch_shapes=[pltpu.VMEM((T * D, HW), f32)],               # embfeat staging
        compiler_params=pltpu.CompilerParams(
            dimension_semantics=("parallel", "arbitrary")),
    )(x_row, u, bw1c, bb1c, bw2c, bb2, ewT, eb,
      hw1T, hb1, hw2T, hb2, hw3T, hb3, lim)

    feature = feat_out.reshape(B, C, T, H, W)
    x_seg = seg_out.reshape(B, 1, T, H, W)
    move = jnp.transpose(move_out, (0, 2, 1)).reshape(B, T, N, 3, 2)
    return x_seg, feature, move, point


# --------------------------------------------------------------------------
# Parameter init (deterministic, synthetic weights).
# --------------------------------------------------------------------------
def init_params(key, channel=4, move_limit=(25.0, 30.0, 35.0)):
    d_model = channel * 8
    ks = jax.random.split(key, 12)
    f32 = jnp.float32
    p = {}
    p['bb_w1'] = 0.5 * jax.random.normal(ks[0], (channel,), f32)
    p['bb_b1'] = 0.1 * jax.random.normal(ks[1], (channel,), f32)
    p['bb_w2'] = 0.5 * jax.random.normal(ks[2], (channel,), f32)
    p['bb_b2'] = 0.1 * jax.random.normal(ks[3], (1,), f32)
    p['emb_w'] = 0.3 * jax.random.normal(ks[4], (channel, d_model), f32)
    p['emb_b'] = 0.1 * jax.random.normal(ks[5], (d_model,), f32)
    sc = 1.0 / jnp.sqrt(jnp.float32(d_model))
    p['h_w1'] = sc * jax.random.normal(ks[6], (d_model, d_model), f32)
    p['h_b1'] = 0.05 * jax.random.normal(ks[7], (d_model,), f32)
    p['h_g1'] = jnp.ones((d_model,), f32)
    p['h_be1'] = jnp.zeros((d_model,), f32)
    p['h_rm1'] = jnp.zeros((d_model,), f32)   # BN running mean (eval mode)
    p['h_rv1'] = jnp.ones((d_model,), f32)    # BN running var  (eval mode)
    p['h_w2'] = sc * jax.random.normal(ks[8], (d_model, d_model), f32)
    p['h_b2'] = 0.05 * jax.random.normal(ks[9], (d_model,), f32)
    p['h_g2'] = jnp.ones((d_model,), f32)
    p['h_be2'] = jnp.zeros((d_model,), f32)
    p['h_rm2'] = jnp.zeros((d_model,), f32)
    p['h_rv2'] = jnp.ones((d_model,), f32)
    p['h_w3'] = sc * jax.random.normal(ks[10], (d_model, 2), f32)
    p['h_b3'] = 0.05 * jax.random.normal(ks[11], (2,), f32)
    p['move_limit'] = jnp.asarray(move_limit, f32)
    return p


# --------------------------------------------------------------------------
# Pure-JAX reference (same math, un-fused, un-reassociated) for a sanity check.
# --------------------------------------------------------------------------
@jax.jit
def _reference_forward(params, inputs, point):
    f32 = jnp.float32
    hp = jax.lax.Precision.HIGHEST
    B, _, T, H, W = inputs.shape
    C, D = params['emb_w'].shape
    N = point.shape[2]
    P, Q = T * H * W, T * N

    x = inputs.reshape(B, P, 1)
    feat = jnp.maximum(x * params['bb_w1'][None, None, :] + params['bb_b1'][None, None, :], 0.0)
    s = jnp.sum(feat * params['bb_w2'][None, None, :], axis=-1, keepdims=True) + params['bb_b2']
    seg = 1.0 / (1.0 + jnp.exp(-s))

    pt = point.astype(f32)
    y_norm = 2.0 * pt[..., 1] / H - 1.0
    x_norm = 2.0 * pt[..., 0] / W - 1.0
    t_norm = jnp.broadcast_to((2.0 * jnp.arange(T, dtype=f32) / T - 1.0)[None, :, None], (B, T, N))
    u_w = ((t_norm + 1.0) * 0.5 * (W - 1)).reshape(B, Q)
    u_h = ((y_norm + 1.0) * 0.5 * (H - 1)).reshape(B, Q)
    u_t = ((x_norm + 1.0) * 0.5 * (T - 1)).reshape(B, Q)

    wt = jnp.maximum(1.0 - jnp.abs(u_t[..., None] - jnp.arange(T, dtype=f32)), 0.0)
    wh = jnp.maximum(1.0 - jnp.abs(u_h[..., None] - jnp.arange(H, dtype=f32)), 0.0)
    ww = jnp.maximum(1.0 - jnp.abs(u_w[..., None] - jnp.arange(W, dtype=f32)), 0.0)
    w3 = jnp.einsum('bqt,bqh,bqw->bqthw', wt, wh, ww).reshape(B, Q, P)
    sampled = jnp.einsum('bqp,bpc->bqc', w3, feat, precision=hp)
    vec = jnp.maximum(jnp.einsum('bqc,cd->bqd', sampled, params['emb_w'], precision=hp)
                      + params['emb_b'], 0.0)
    vec = jnp.where(x_norm.reshape(B, Q, 1) < 0.0, 0.0, vec)

    eps = 1e-5
    def bn(h, g, be, rm, rv):
        return (h - rm) * jax.lax.rsqrt(rv + eps) * g + be
    h = jnp.maximum(bn(jnp.einsum('bqd,de->bqe', vec, params['h_w1'], precision=hp) + params['h_b1'],
                       params['h_g1'], params['h_be1'], params['h_rm1'], params['h_rv1']), 0.0)
    h = jnp.maximum(bn(jnp.einsum('bqd,de->bqe', h, params['h_w2'], precision=hp) + params['h_b2'],
                       params['h_g2'], params['h_be2'], params['h_rm2'], params['h_rv2']), 0.0)
    z = jnp.einsum('bqd,de->bqe', h, params['h_w3'], precision=hp) + params['h_b3']
    m = 2.0 / (1.0 + jnp.exp(-z)) - 1.0
    move = (m[:, :, None, :] * params['move_limit'][None, None, :, None]).reshape(B, T, N, 3, 2)

    feature = jnp.transpose(feat.reshape(B, T, H, W, C), (0, 4, 1, 2, 3))
    x_seg = jnp.transpose(seg.reshape(B, T, H, W, 1), (0, 4, 1, 2, 3))
    return x_seg, feature, move, point


if __name__ == "__main__":
    key = jax.random.PRNGKey(0)
    kp, ki, kpt = jax.random.split(key, 3)
    B, T, H, W, N = 2, 8, 16, 16, 8
    channel = 4
    params = init_params(kp, channel=channel)
    inputs = jax.random.normal(ki, (B, 1, T, H, W), jnp.float32)
    point = jax.random.uniform(kpt, (B, T, N, 2), jnp.float32, minval=-2.0, maxval=14.0)

    x_seg, feature, move, point_out = jax.block_until_ready(
        mtr3_forward(params, inputs, point))

    assert x_seg.shape == (B, 1, T, H, W)
    assert feature.shape == (B, channel, T, H, W)
    assert move.shape == (B, T, N, 3, 2)
    assert point_out.shape == (B, T, N, 2)

    # numerical sanity check against the un-fused pure-JAX reference
    r_seg, r_feat, r_move, _ = jax.block_until_ready(
        _reference_forward(params, inputs, point))
    assert bool(jnp.allclose(x_seg, r_seg, atol=1e-4, rtol=1e-4))
    assert bool(jnp.allclose(feature, r_feat, atol=1e-4, rtol=1e-4))
    assert bool(jnp.allclose(move, r_move, atol=5e-3, rtol=5e-3))

    print("KERNEL_OK")
</pallas_src>

<mosaic_0001>
module attributes {stable_mosaic.version = 11 : i64} {
  func.func @_mtr3_kernel(%arg0: i32, %arg1: i32, %arg2: memref<1x1x256xf32, #tpu.memory_space<vmem>>, %arg3: memref<1x4x64xf32, #tpu.memory_space<vmem>>, %arg4: memref<4x1xf32, #tpu.memory_space<vmem>>, %arg5: memref<4x1xf32, #tpu.memory_space<vmem>>, %arg6: memref<4x1xf32, #tpu.memory_space<vmem>>, %arg7: memref<1x1xf32, #tpu.memory_space<vmem>>, %arg8: memref<32x4xf32, #tpu.memory_space<vmem>>, %arg9: memref<32x1xf32, #tpu.memory_space<vmem>>, %arg10: memref<32x32xf32, #tpu.memory_space<vmem>>, %arg11: memref<32x1xf32, #tpu.memory_space<vmem>>, %arg12: memref<32x32xf32, #tpu.memory_space<vmem>>, %arg13: memref<32x1xf32, #tpu.memory_space<vmem>>, %arg14: memref<6x32xf32, #tpu.memory_space<vmem>>, %arg15: memref<6x1xf32, #tpu.memory_space<vmem>>, %arg16: memref<6x1xf32, #tpu.memory_space<vmem>>, %arg17: memref<1x4x256xf32, #tpu.memory_space<vmem>>, %arg18: memref<1x1x256xf32, #tpu.memory_space<vmem>>, %arg19: memref<1x6x64xf32, #tpu.memory_space<vmem>>, %arg20: memref<256x256xf32, #tpu.memory_space<vmem>>) attributes {dimension_semantics = [#tpu.dimension_semantics<parallel>, #tpu.dimension_semantics<arbitrary>], iteration_bounds = array<i64: 2, 8>, scalar_prefetch = 0 : i64, scratch_operands = 1 : i64, tpu.core_type = #tpu.core_type<tc>, window_params = [{transform_indices = @transform_0, window_bounds = array<i64: 1, 1, 256>}, {transform_indices = @transform_1, window_bounds = array<i64: 1, 4, 64>}, {pipeline_mode = #tpu.pipeline_mode<synchronous>, transform_indices = @transform_2, window_bounds = array<i64: 4, 1>}, {pipeline_mode = #tpu.pipeline_mode<synchronous>, transform_indices = @transform_3, window_bounds = array<i64: 4, 1>}, {pipeline_mode = #tpu.pipeline_mode<synchronous>, transform_indices = @transform_4, window_bounds = array<i64: 4, 1>}, {pipeline_mode = #tpu.pipeline_mode<synchronous>, transform_indices = @transform_5, window_bounds = array<i64: 1, 1>}, {pipeline_mode = #tpu.pipeline_mode<synchronous>, transform_indices = @transform_6, window_bounds = array<i64: 32, 4>}, {pipeline_mode = #tpu.pipeline_mode<synchronous>, transform_indices = @transform_7, window_bounds = array<i64: 32, 1>}, {pipeline_mode = #tpu.pipeline_mode<synchronous>, transform_indices = @transform_8, window_bounds = array<i64: 32, 32>}, {pipeline_mode = #tpu.pipeline_mode<synchronous>, transform_indices = @transform_9, window_bounds = array<i64: 32, 1>}, {pipeline_mode = #tpu.pipeline_mode<synchronous>, transform_indices = @transform_10, window_bounds = array<i64: 32, 32>}, {pipeline_mode = #tpu.pipeline_mode<synchronous>, transform_indices = @transform_11, window_bounds = array<i64: 32, 1>}, {pipeline_mode = #tpu.pipeline_mode<synchronous>, transform_indices = @transform_12, window_bounds = array<i64: 6, 32>}, {pipeline_mode = #tpu.pipeline_mode<synchronous>, transform_indices = @transform_13, window_bounds = array<i64: 6, 1>}, {pipeline_mode = #tpu.pipeline_mode<synchronous>, transform_indices = @transform_14, window_bounds = array<i64: 6, 1>}, {transform_indices = @transform_15, window_bounds = array<i64: 1, 4, 256>}, {transform_indices = @transform_16, window_bounds = array<i64: 1, 1, 256>}, {transform_indices = @transform_17, window_bounds = array<i64: 1, 6, 64>}]} {
    %c0 = arith.constant 0 : index
    %c0_0 = arith.constant 0 : index
    %c0_1 = arith.constant 0 : index
    %0 = vector.load %arg2[%c0, %c0_0, %c0_1] : memref<1x1x256xf32, #tpu.memory_space<vmem>>, vector<1x1x256xf32>
    %1 = vector.shape_cast %0 : vector<1x1x256xf32> to vector<1x256xf32>
    %c0_2 = arith.constant 0 : index
    %c0_3 = arith.constant 0 : index
    %2 = vector.load %arg4[%c0_2, %c0_3] : memref<4x1xf32, #tpu.memory_space<vmem>>, vector<4x1xf32>
    %3 = vector.broadcast %2 : vector<4x1xf32> to vector<4x256xf32>
    %4 = vector.broadcast %1 : vector<1x256xf32> to vector<4x256xf32>
    %5 = arith.mulf %3, %4 : vector<4x256xf32>
    %c0_4 = arith.constant 0 : index
    %c0_5 = arith.constant 0 : index
    %6 = vector.load %arg5[%c0_4, %c0_5] : memref<4x1xf32, #tpu.memory_space<vmem>>, vector<4x1xf32>
    %7 = vector.broadcast %6 : vector<4x1xf32> to vector<4x256xf32>
    %8 = arith.addf %5, %7 : vector<4x256xf32>
    %cst = arith.constant 0.000000e+00 : f32
    %9 = vector.broadcast %cst : f32 to vector<4x256xf32>
    %10 = arith.maximumf %8, %9 : vector<4x256xf32>
    %c0_6 = arith.constant 0 : index
    %c0_7 = arith.constant 0 : index
    %c0_8 = arith.constant 0 : index
    %11 = vector.load %arg17[%c0_6, %c0_7, %c0_8] : memref<1x4x256xf32, #tpu.memory_space<vmem>>, vector<1x4x256xf32>
    %12 = vector.shape_cast %11 : vector<1x4x256xf32> to vector<4x256xf32>
    %13 = vector.shape_cast %10 : vector<4x256xf32> to vector<1x4x256xf32>
    tpu.vector_store %arg17[%c0_6, %c0_7, %c0_8], %13 {strides = array<i32>} : memref<1x4x256xf32, #tpu.memory_space<vmem>>, vector<1x4x256xf32>,
    %c0_9 = arith.constant 0 : index
    %c0_10 = arith.constant 0 : index
    %14 = vector.load %arg6[%c0_9, %c0_10] : memref<4x1xf32, #tpu.memory_space<vmem>>, vector<4x1xf32>
    %15 = vector.broadcast %14 : vector<4x1xf32> to vector<4x256xf32>
    %16 = arith.mulf %10, %15 : vector<4x256xf32>
    %cst_11 = arith.constant dense<0.000000e+00> : vector<256xf32>
    %17 = vector.multi_reduction <add>, %16, %cst_11 [0] : vector<4x256xf32> to vector<256xf32>
    %18 = vector.shape_cast %17 : vector<256xf32> to vector<1x256xf32>
    %c0_12 = arith.constant 0 : index
    %c0_13 = arith.constant 0 : index
    %19 = vector.load %arg7[%c0_12, %c0_13] : memref<1x1xf32, #tpu.memory_space<vmem>>, vector<1x1xf32>
    %20 = vector.broadcast %19 : vector<1x1xf32> to vector<1x256xf32>
    %21 = arith.addf %18, %20 : vector<1x256xf32>
    %cst_14 = arith.constant 0.000000e+00 : f32
    %22 = vector.broadcast %cst_14 : f32 to vector<1x256xf32>
    %23 = arith.subf %22, %21 : vector<1x256xf32>
    %24 = math.exp %23 : vector<1x256xf32>
    %cst_15 = arith.constant 1.000000e+00 : f32
    %25 = vector.broadcast %cst_15 : f32 to vector<1x256xf32>
    %26 = arith.addf %25, %24 : vector<1x256xf32>
    %cst_16 = arith.constant 1.000000e+00 : f32
    %27 = vector.broadcast %cst_16 : f32 to vector<1x256xf32>
    %28 = arith.divf %27, %26 : vector<1x256xf32>
    %c0_17 = arith.constant 0 : index
    %c0_18 = arith.constant 0 : index
    %c0_19 = arith.constant 0 : index
    %29 = vector.load %arg18[%c0_17, %c0_18, %c0_19] : memref<1x1x256xf32, #tpu.memory_space<vmem>>, vector<1x1x256xf32>
    %30 = vector.shape_cast %29 : vector<1x1x256xf32> to vector<1x256xf32>
    %31 = vector.shape_cast %28 : vector<1x256xf32> to vector<1x1x256xf32>
    tpu.vector_store %arg18[%c0_17, %c0_18, %c0_19], %31 {strides = array<i32>} : memref<1x1x256xf32, #tpu.memory_space<vmem>>, vector<1x1x256xf32>,
    %c0_20 = arith.constant 0 : index
    %c0_21 = arith.constant 0 : index
    %32 = vector.load %arg8[%c0_20, %c0_21] : memref<32x4xf32, #tpu.memory_space<vmem>>, vector<32x4xf32>
    %33 = vector.extract_strided_slice %32 {offsets = [0, 0], sizes = [32, 1], strides = [1, 1]} : vector<32x4xf32> to vector<32x1xf32>
    %34 = vector.extract_strided_slice %10 {offsets = [0, 0], sizes = [1, 256], strides = [1, 1]} : vector<4x256xf32> to vector<1x256xf32>
    %35 = vector.broadcast %33 : vector<32x1xf32> to vector<32x256xf32>
    %36 = vector.broadcast %34 : vector<1x256xf32> to vector<32x256xf32>
    %37 = arith.mulf %35, %36 : vector<32x256xf32>
    %38 = vector.extract_strided_slice %32 {offsets = [0, 1], sizes = [32, 1], strides = [1, 1]} : vector<32x4xf32> to vector<32x1xf32>
    %39 = vector.extract_strided_slice %10 {offsets = [1, 0], sizes = [1, 256], strides = [1, 1]} : vector<4x256xf32> to vector<1x256xf32>
    %40 = vector.broadcast %38 : vector<32x1xf32> to vector<32x256xf32>
    %41 = vector.broadcast %39 : vector<1x256xf32> to vector<32x256xf32>
    %42 = arith.mulf %40, %41 : vector<32x256xf32>
    %43 = arith.addf %37, %42 : vector<32x256xf32>
    %44 = vector.extract_strided_slice %32 {offsets = [0, 2], sizes = [32, 1], strides = [1, 1]} : vector<32x4xf32> to vector<32x1xf32>
    %45 = vector.extract_strided_slice %10 {offsets = [2, 0], sizes = [1, 256], strides = [1, 1]} : vector<4x256xf32> to vector<1x256xf32>
    %46 = vector.broadcast %44 : vector<32x1xf32> to vector<32x256xf32>
    %47 = vector.broadcast %45 : vector<1x256xf32> to vector<32x256xf32>
    %48 = arith.mulf %46, %47 : vector<32x256xf32>
    %49 = arith.addf %43, %48 : vector<32x256xf32>
    %50 = vector.extract_strided_slice %32 {offsets = [0, 3], sizes = [32, 1], strides = [1, 1]} : vector<32x4xf32> to vector<32x1xf32>
    %51 = vector.extract_strided_slice %10 {offsets = [3, 0], sizes = [1, 256], strides = [1, 1]} : vector<4x256xf32> to vector<1x256xf32>
    %52 = vector.broadcast %50 : vector<32x1xf32> to vector<32x256xf32>
    %53 = vector.broadcast %51 : vector<1x256xf32> to vector<32x256xf32>
    %54 = arith.mulf %52, %53 : vector<32x256xf32>
    %55 = arith.addf %49, %54 : vector<32x256xf32>
    %c32_i32 = arith.constant 32 : i32
    %56 = arith.muli %arg1, %c32_i32 : i32
    %57 = tpu.assume_multiple %56, 32 : i32
    %58 = arith.index_cast %57 : i32 to index
    %c0_22 = arith.constant 0 : index
    %59 = vector.load %arg20[%58, %c0_22] : memref<256x256xf32, #tpu.memory_space<vmem>>, vector<32x256xf32>
    tpu.vector_store %arg20[%58, %c0_22], %55 {strides = array<i32>} : memref<256x256xf32, #tpu.memory_space<vmem>>, vector<32x256xf32>,
    %c7_i32 = arith.constant 7 : i32
    %60 = arith.cmpi eq, %arg1, %c7_i32 : i32
    %61 = arith.extui %60 : i1 to i32
    %c0_i32 = arith.constant 0 : i32
    %62 = arith.cmpi ne, %61, %c0_i32 : i32
    scf.if %62 {
      %c0_23 = arith.constant 0 : index
      %c0_24 = arith.constant 0 : index
      %c0_25 = arith.constant 0 : index
      %63 = vector.load %arg3[%c0_23, %c0_24, %c0_25] : memref<1x4x64xf32, #tpu.memory_space<vmem>>, vector<1x4x64xf32>
      %64 = vector.shape_cast %63 : vector<1x4x64xf32> to vector<4x64xf32>
      %65 = vector.extract_strided_slice %64 {offsets = [0, 0], sizes = [1, 64], strides = [1, 1]} : vector<4x64xf32> to vector<1x64xf32>
      %66 = vector.extract_strided_slice %64 {offsets = [1, 0], sizes = [1, 64], strides = [1, 1]} : vector<4x64xf32> to vector<1x64xf32>
      %67 = vector.extract_strided_slice %64 {offsets = [2, 0], sizes = [1, 64], strides = [1, 1]} : vector<4x64xf32> to vector<1x64xf32>
      %68 = vector.extract_strided_slice %64 {offsets = [3, 0], sizes = [1, 64], strides = [1, 1]} : vector<4x64xf32> to vector<1x64xf32>
      %69 = tpu.iota {dimensions = array<i32: 0>} : vector<16x64xi32>
      %70 = arith.sitofp %69 : vector<16x64xi32> to vector<16x64xf32>
      %71 = tpu.iota {dimensions = array<i32: 0>} : vector<16x64xi32>
      %72 = arith.sitofp %71 : vector<16x64xi32> to vector<16x64xf32>
      %73 = tpu.iota {dimensions = array<i32: 0>} : vector<8x64xi32>
      %74 = arith.sitofp %73 : vector<8x64xi32> to vector<8x64xf32>
      %75 = vector.broadcast %66 : vector<1x64xf32> to vector<16x64xf32>
      %76 = arith.subf %70, %75 : vector<16x64xf32>
      %77 = math.absf %76 : vector<16x64xf32>
      %cst_26 = arith.constant 1.000000e+00 : f32
      %78 = vector.broadcast %cst_26 : f32 to vector<16x64xf32>
      %79 = arith.subf %78, %77 : vector<16x64xf32>
      %cst_27 = arith.constant 0.000000e+00 : f32
      %80 = vector.broadcast %cst_27 : f32 to vector<16x64xf32>
      %81 = arith.maximumf %79, %80 : vector<16x64xf32>
      %82 = vector.broadcast %65 : vector<1x64xf32> to vector<16x64xf32>
      %83 = arith.subf %72, %82 : vector<16x64xf32>
      %84 = math.absf %83 : vector<16x64xf32>
      %cst_28 = arith.constant 1.000000e+00 : f32
      %85 = vector.broadcast %cst_28 : f32 to vector<16x64xf32>
      %86 = arith.subf %85, %84 : vector<16x64xf32>
      %cst_29 = arith.constant 0.000000e+00 : f32
      %87 = vector.broadcast %cst_29 : f32 to vector<16x64xf32>
      %88 = arith.maximumf %86, %87 : vector<16x64xf32>
      %89 = vector.broadcast %67 : vector<1x64xf32> to vector<8x64xf32>
      %90 = arith.subf %74, %89 : vector<8x64xf32>
      %91 = math.absf %90 : vector<8x64xf32>
      %cst_30 = arith.constant 1.000000e+00 : f32
      %92 = vector.broadcast %cst_30 : f32 to vector<8x64xf32>
      %93 = arith.subf %92, %91 : vector<8x64xf32>
      %cst_31 = arith.constant 0.000000e+00 : f32
      %94 = vector.broadcast %cst_31 : f32 to vector<8x64xf32>
      %95 = arith.maximumf %93, %94 : vector<8x64xf32>
      %96 = vector.shape_cast %81 : vector<16x64xf32> to vector<16x1x64xf32>
      %97 = vector.shape_cast %88 : vector<16x64xf32> to vector<1x16x64xf32>
      %98 = vector.broadcast %96 : vector<16x1x64xf32> to vector<16x16x64xf32>
      %99 = vector.broadcast %97 : vector<1x16x64xf32> to vector<16x16x64xf32>
      %100 = arith.mulf %98, %99 : vector<16x16x64xf32>
      %101 = vector.shape_cast %100 : vector<16x16x64xf32> to vector<256x64xf32>
      %c0_32 = arith.constant 0 : index
      %c0_33 = arith.constant 0 : index
      %102 = vector.load %arg20[%c0_32, %c0_33] : memref<256x256xf32, #tpu.memory_space<vmem>>, vector<256x256xf32>
      %cst_34 = arith.constant dense<0.000000e+00> : vector<256x64xf32>
      %103 = tpu.matmul %102, %101, %cst_34 {dimension_numbers = #tpu.dot_dimension_numbers<[1], [0], [0], [1], [0, 0, 1, 1], [], []>} : vector<256x256xf32>, vector<256x64xf32>, vector<256x64xf32> -> vector<256x64xf32>
      %104 = vector.extract_strided_slice %95 {offsets = [0, 0], sizes = [1, 64], strides = [1, 1]} : vector<8x64xf32> to vector<1x64xf32>
      %105 = vector.extract_strided_slice %103 {offsets = [0, 0], sizes = [32, 64], strides = [1, 1]} : vector<256x64xf32> to vector<32x64xf32>
      %106 = vector.broadcast %104 : vector<1x64xf32> to vector<32x64xf32>
      %107 = arith.mulf %106, %105 : vector<32x64xf32>
      %108 = vector.extract_strided_slice %95 {offsets = [1, 0], sizes = [1, 64], strides = [1, 1]} : vector<8x64xf32> to vector<1x64xf32>
      %109 = vector.extract_strided_slice %103 {offsets = [32, 0], sizes = [32, 64], strides = [1, 1]} : vector<256x64xf32> to vector<32x64xf32>
      %110 = vector.broadcast %108 : vector<1x64xf32> to vector<32x64xf32>
      %111 = arith.mulf %110, %109 : vector<32x64xf32>
      %112 = arith.addf %107, %111 : vector<32x64xf32>
      %113 = vector.extract_strided_slice %95 {offsets = [2, 0], sizes = [1, 64], strides = [1, 1]} : vector<8x64xf32> to vector<1x64xf32>
      %114 = vector.extract_strided_slice %103 {offsets = [64, 0], sizes = [32, 64], strides = [1, 1]} : vector<256x64xf32> to vector<32x64xf32>
      %115 = vector.broadcast %113 : vector<1x64xf32> to vector<32x64xf32>
      %116 = arith.mulf %115, %114 : vector<32x64xf32>
      %117 = arith.addf %112, %116 : vector<32x64xf32>
      %118 = vector.extract_strided_slice %95 {offsets = [3, 0], sizes = [1, 64], strides = [1, 1]} : vector<8x64xf32> to vector<1x64xf32>
      %119 = vector.extract_strided_slice %103 {offsets = [96, 0], sizes = [32, 64], strides = [1, 1]} : vector<256x64xf32> to vector<32x64xf32>
      %120 = vector.broadcast %118 : vector<1x64xf32> to vector<32x64xf32>
      %121 = arith.mulf %120, %119 : vector<32x64xf32>
      %122 = arith.addf %117, %121 : vector<32x64xf32>
      %123 = vector.extract_strided_slice %95 {offsets = [4, 0], sizes = [1, 64], strides = [1, 1]} : vector<8x64xf32> to vector<1x64xf32>
      %124 = vector.extract_strided_slice %103 {offsets = [128, 0], sizes = [32, 64], strides = [1, 1]} : vector<256x64xf32> to vector<32x64xf32>
      %125 = vector.broadcast %123 : vector<1x64xf32> to vector<32x64xf32>
      %126 = arith.mulf %125, %124 : vector<32x64xf32>
      %127 = arith.addf %122, %126 : vector<32x64xf32>
      %128 = vector.extract_strided_slice %95 {offsets = [5, 0], sizes = [1, 64], strides = [1, 1]} : vector<8x64xf32> to vector<1x64xf32>
      %129 = vector.extract_strided_slice %103 {offsets = [160, 0], sizes = [32, 64], strides = [1, 1]} : vector<256x64xf32> to vector<32x64xf32>
      %130 = vector.broadcast %128 : vector<1x64xf32> to vector<32x64xf32>
      %131 = arith.mulf %130, %129 : vector<32x64xf32>
      %132 = arith.addf %127, %131 : vector<32x64xf32>
      %133 = vector.extract_strided_slice %95 {offsets = [6, 0], sizes = [1, 64], strides = [1, 1]} : vector<8x64xf32> to vector<1x64xf32>
      %134 = vector.extract_strided_slice %103 {offsets = [192, 0], sizes = [32, 64], strides = [1, 1]} : vector<256x64xf32> to vector<32x64xf32>
      %135 = vector.broadcast %133 : vector<1x64xf32> to vector<32x64xf32>
      %136 = arith.mulf %135, %134 : vector<32x64xf32>
      %137 = arith.addf %132, %136 : vector<32x64xf32>
      %138 = vector.extract_strided_slice %95 {offsets = [7, 0], sizes = [1, 64], strides = [1, 1]} : vector<8x64xf32> to vector<1x64xf32>
      %139 = vector.extract_strided_slice %103 {offsets = [224, 0], sizes = [32, 64], strides = [1, 1]} : vector<256x64xf32> to vector<32x64xf32>
      %140 = vector.broadcast %138 : vector<1x64xf32> to vector<32x64xf32>
      %141 = arith.mulf %140, %139 : vector<32x64xf32>
      %142 = arith.addf %137, %141 : vector<32x64xf32>
      %c0_35 = arith.constant 0 : index
      %c0_36 = arith.constant 0 : index
      %143 = vector.load %arg9[%c0_35, %c0_36] : memref<32x1xf32, #tpu.memory_space<vmem>>, vector<32x1xf32>
      %144 = vector.broadcast %143 : vector<32x1xf32> to vector<32x64xf32>
      %145 = arith.addf %142, %144 : vector<32x64xf32>
      %cst_37 = arith.constant 0.000000e+00 : f32
      %146 = vector.broadcast %cst_37 : f32 to vector<32x64xf32>
      %147 = arith.maximumf %145, %146 : vector<32x64xf32>
      %cst_38 = arith.constant 0.000000e+00 : f32
      %148 = vector.broadcast %cst_38 : f32 to vector<1x64xf32>
      %149 = arith.cmpf olt, %68, %148 : vector<1x64xf32>
      %cst_39 = arith.constant 0.000000e+00 : f32
      %150 = vector.shape_cast %149 : vector<1x64xi1> to vector<1x64xi1>
      %151 = vector.broadcast %150 : vector<1x64xi1> to vector<32x64xi1>
      %152 = vector.broadcast %cst_39 : f32 to vector<32x64xf32>
      %153 = arith.select %151, %152, %147 : vector<32x64xi1>, vector<32x64xf32>
      %c0_40 = arith.constant 0 : index
      %c0_41 = arith.constant 0 : index
      %154 = vector.load %arg10[%c0_40, %c0_41] : memref<32x32xf32, #tpu.memory_space<vmem>>, vector<32x32xf32>
      %cst_42 = arith.constant dense<0.000000e+00> : vector<32x64xf32>
      %155 = tpu.matmul %154, %153, %cst_42 {dimension_numbers = #tpu.dot_dimension_numbers<[1], [0], [0], [1], [0, 0, 1, 1], [], []>} : vector<32x32xf32>, vector<32x64xf32>, vector<32x64xf32> -> vector<32x64xf32>
      %c0_43 = arith.constant 0 : index
      %c0_44 = arith.constant 0 : index
      %156 = vector.load %arg11[%c0_43, %c0_44] : memref<32x1xf32, #tpu.memory_space<vmem>>, vector<32x1xf32>
      %157 = vector.broadcast %156 : vector<32x1xf32> to vector<32x64xf32>
      %158 = arith.addf %155, %157 : vector<32x64xf32>
      %cst_45 = arith.constant 0.000000e+00 : f32
      %159 = vector.broadcast %cst_45 : f32 to vector<32x64xf32>
      %160 = arith.maximumf %158, %159 : vector<32x64xf32>
      %c0_46 = arith.constant 0 : index
      %c0_47 = arith.constant 0 : index
      %161 = vector.load %arg12[%c0_46, %c0_47] : memref<32x32xf32, #tpu.memory_space<vmem>>, vector<32x32xf32>
      %cst_48 = arith.constant dense<0.000000e+00> : vector<32x64xf32>
      %162 = tpu.matmul %161, %160, %cst_48 {dimension_numbers = #tpu.dot_dimension_numbers<[1], [0], [0], [1], [0, 0, 1, 1], [], []>} : vector<32x32xf32>, vector<32x64xf32>, vector<32x64xf32> -> vector<32x64xf32>
      %c0_49 = arith.constant 0 : index
      %c0_50 = arith.constant 0 : index
      %163 = vector.load %arg13[%c0_49, %c0_50] : memref<32x1xf32, #tpu.memory_space<vmem>>, vector<32x1xf32>
      %164 = vector.broadcast %163 : vector<32x1xf32> to vector<32x64xf32>
      %165 = arith.addf %162, %164 : vector<32x64xf32>
      %cst_51 = arith.constant 0.000000e+00 : f32
      %166 = vector.broadcast %cst_51 : f32 to vector<32x64xf32>
      %167 = arith.maximumf %165, %166 : vector<32x64xf32>
      %c0_52 = arith.constant 0 : index
      %c0_53 = arith.constant 0 : index
      %168 = vector.load %arg14[%c0_52, %c0_53] : memref<6x32xf32, #tpu.memory_space<vmem>>, vector<6x32xf32>
      %cst_54 = arith.constant dense<0.000000e+00> : vector<6x64xf32>
      %169 = tpu.matmul %168, %167, %cst_54 {dimension_numbers = #tpu.dot_dimension_numbers<[1], [0], [0], [1], [0, 0, 1, 1], [], []>} : vector<6x32xf32>, vector<32x64xf32>, vector<6x64xf32> -> vector<6x64xf32>
      %c0_55 = arith.constant 0 : index
      %c0_56 = arith.constant 0 : index
      %170 = vector.load %arg15[%c0_55, %c0_56] : memref<6x1xf32, #tpu.memory_space<vmem>>, vector<6x1xf32>
      %171 = vector.broadcast %170 : vector<6x1xf32> to vector<6x64xf32>
      %172 = arith.addf %169, %171 : vector<6x64xf32>
      %cst_57 = arith.constant 5.000000e-01 : f32
      %173 = vector.broadcast %cst_57 : f32 to vector<6x64xf32>
      %174 = arith.mulf %173, %172 : vector<6x64xf32>
      %175 = math.tanh %174 : vector<6x64xf32>
      %c0_58 = arith.constant 0 : index
      %c0_59 = arith.constant 0 : index
      %176 = vector.load %arg16[%c0_58, %c0_59] : memref<6x1xf32, #tpu.memory_space<vmem>>, vector<6x1xf32>
      %177 = vector.broadcast %176 : vector<6x1xf32> to vector<6x64xf32>
      %178 = arith.mulf %175, %177 : vector<6x64xf32>
      %c0_60 = arith.constant 0 : index
      %c0_61 = arith.constant 0 : index
      %c0_62 = arith.constant 0 : index
      %179 = vector.load %arg19[%c0_60, %c0_61, %c0_62] : memref<1x6x64xf32, #tpu.memory_space<vmem>>, vector<1x6x64xf32>
      %180 = vector.shape_cast %179 : vector<1x6x64xf32> to vector<6x64xf32>
      %181 = vector.shape_cast %178 : vector<6x64xf32> to vector<1x6x64xf32>
      tpu.vector_store %arg19[%c0_60, %c0_61, %c0_62], %181 {strides = array<i32>} : memref<1x6x64xf32, #tpu.memory_space<vmem>>, vector<1x6x64xf32>,
    } else {
    }
    return
  }
  func.func @transform_0(%arg0: i32, %arg1: i32) -> (i32, i32, i32) {
    %c0_i32 = arith.constant 0 : i32
    %c0_i32_0 = arith.constant 0 : i32
    return %arg0, %c0_i32, %arg1 : i32, i32, i32
  }
  func.func @transform_1(%arg0: i32, %arg1: i32) -> (i32, i32, i32) {
    %c0_i32 = arith.constant 0 : i32
    %c0_i32_0 = arith.constant 0 : i32
    %c0_i32_1 = arith.constant 0 : i32
    return %arg0, %c0_i32, %c0_i32_0 : i32, i32, i32
  }
  func.func @transform_2(%arg0: i32, %arg1: i32) -> (i32, i32) {
    %c0_i32 = arith.constant 0 : i32
    %c0_i32_0 = arith.constant 0 : i32
    %c0_i32_1 = arith.constant 0 : i32
    return %c0_i32, %c0_i32_0 : i32, i32
  }
  func.func @transform_3(%arg0: i32, %arg1: i32) -> (i32, i32) {
    %c0_i32 = arith.constant 0 : i32
    %c0_i32_0 = arith.constant 0 : i32
    %c0_i32_1 = arith.constant 0 : i32
    return %c0_i32, %c0_i32_0 : i32, i32
  }
  func.func @transform_4(%arg0: i32, %arg1: i32) -> (i32, i32) {
    %c0_i32 = arith.constant 0 : i32
    %c0_i32_0 = arith.constant 0 : i32
    %c0_i32_1 = arith.constant 0 : i32
    return %c0_i32, %c0_i32_0 : i32, i32
  }
  func.func @transform_5(%arg0: i32, %arg1: i32) -> (i32, i32) {
    %c0_i32 = arith.constant 0 : i32
    %c0_i32_0 = arith.constant 0 : i32
    %c0_i32_1 = arith.constant 0 : i32
    return %c0_i32, %c0_i32_0 : i32, i32
  }
  func.func @transform_6(%arg0: i32, %arg1: i32) -> (i32, i32) {
    %c0_i32 = arith.constant 0 : i32
    %c0_i32_0 = arith.constant 0 : i32
    %c0_i32_1 = arith.constant 0 : i32
    return %c0_i32, %c0_i32_0 : i32, i32
  }
  func.func @transform_7(%arg0: i32, %arg1: i32) -> (i32, i32) {
    %c0_i32 = arith.constant 0 : i32
    %c0_i32_0 = arith.constant 0 : i32
    %c0_i32_1 = arith.constant 0 : i32
    return %c0_i32, %c0_i32_0 : i32, i32
  }
  func.func @transform_8(%arg0: i32, %arg1: i32) -> (i32, i32) {
    %c0_i32 = arith.constant 0 : i32
    %c0_i32_0 = arith.constant 0 : i32
    %c0_i32_1 = arith.constant 0 : i32
    return %c0_i32, %c0_i32_0 : i32, i32
  }
  func.func @transform_9(%arg0: i32, %arg1: i32) -> (i32, i32) {
    %c0_i32 = arith.constant 0 : i32
    %c0_i32_0 = arith.constant 0 : i32
    %c0_i32_1 = arith.constant 0 : i32
    return %c0_i32, %c0_i32_0 : i32, i32
  }
  func.func @transform_10(%arg0: i32, %arg1: i32) -> (i32, i32) {
    %c0_i32 = arith.constant 0 : i32
    %c0_i32_0 = arith.constant 0 : i32
    %c0_i32_1 = arith.constant 0 : i32
    return %c0_i32, %c0_i32_0 : i32, i32
  }
  func.func @transform_11(%arg0: i32, %arg1: i32) -> (i32, i32) {
    %c0_i32 = arith.constant 0 : i32
    %c0_i32_0 = arith.constant 0 : i32
    %c0_i32_1 = arith.constant 0 : i32
    return %c0_i32, %c0_i32_0 : i32, i32
  }
  func.func @transform_12(%arg0: i32, %arg1: i32) -> (i32, i32) {
    %c0_i32 = arith.constant 0 : i32
    %c0_i32_0 = arith.constant 0 : i32
    %c0_i32_1 = arith.constant 0 : i32
    return %c0_i32, %c0_i32_0 : i32, i32
  }
  func.func @transform_13(%arg0: i32, %arg1: i32) -> (i32, i32) {
    %c0_i32 = arith.constant 0 : i32
    %c0_i32_0 = arith.constant 0 : i32
    %c0_i32_1 = arith.constant 0 : i32
    return %c0_i32, %c0_i32_0 : i32, i32
  }
  func.func @transform_14(%arg0: i32, %arg1: i32) -> (i32, i32) {
    %c0_i32 = arith.constant 0 : i32
    %c0_i32_0 = arith.constant 0 : i32
    %c0_i32_1 = arith.constant 0 : i32
    return %c0_i32, %c0_i32_0 : i32, i32
  }
  func.func @transform_15(%arg0: i32, %arg1: i32) -> (i32, i32, i32) {
    %c0_i32 = arith.constant 0 : i32
    %c0_i32_0 = arith.constant 0 : i32
    return %arg0, %c0_i32, %arg1 : i32, i32, i32
  }
  func.func @transform_16(%arg0: i32, %arg1: i32) -> (i32, i32, i32) {
    %c0_i32 = arith.constant 0 : i32
    %c0_i32_0 = arith.constant 0 : i32
    return %arg0, %c0_i32, %arg1 : i32, i32, i32
  }
  func.func @transform_17(%arg0: i32, %arg1: i32) -> (i32, i32, i32) {
    %c0_i32 = arith.constant 0 : i32
    %c0_i32_0 = arith.constant 0 : i32
    %c0_i32_1 = arith.constant 0 : i32
    return %arg0, %c0_i32, %c0_i32_0 : i32, i32, i32
  }
}

</mosaic_0001>

<llo_original>
// kernel: tile.14
$region0: #{tile.14}
  %s0 = inlined_call_operand.vmem [shape: f32[3,2,32], index: 0, kind: input, shape index: {}]
  %s1 = inlined_call_operand.vmem [shape: f32[6,32], index: 1, kind: output, shape index: {}]
  $region1: #{tile.14} parent=0
    #allocation0 [shape = 'u8[12288]{0}', space=vmem, size = 0x3000, scoped, tag = 'scoped mem for input reshape']
    %s3 = sshllo.u32 0, 2
    %s4 = smul.addr 2, 2
    %s5 = scalar_lea.vmem %s0, %s4
    %v6 = vld [vmem:[%s5] sm:%s3]
    %s7 = scalar_lea.vmem [#allocation0], 16
    %8 = vst [vmem:[%s7] sm:%s3] %v6
    %s9 = scalar_lea.vmem %s0, 2
    %v10 = vld [vmem:[%s9] sm:%s3]
    %s11 = scalar_lea.vmem [#allocation0], 8
    %12 = vst [vmem:[%s11] sm:%s3] %v10
    %v13 = vld [vmem:[%s0] sm:%s3]
    %14 = vst [vmem:[#allocation0] sm:%s3] %v13
    %v15 = vld [vmem:[#allocation0] sm:$0x3]
    %vm16 = vcmask 261120
    %17 = vst.msk [vmem:[%s1] sm:$0x3] %vm16, %v15
    %s18 = scalar_lea.vmem [#allocation0], 8
    %v19 = vld [vmem:[%s18] sm:$0x3]
    %vm20 = vcmask 261120
    %s21 = scalar_lea.vmem %s1, 2
    %22 = vst.msk [vmem:[%s21] sm:$0x3] %vm20, %v19
    %s23 = scalar_lea.vmem [#allocation0], 16
    %v24 = vld [vmem:[%s23] sm:$0x3]
    %vm25 = vcmask 261120
    %s26 = scalar_lea.vmem %s1, 4
    %27 = vst.msk [vmem:[%s26] sm:$0x3] %vm25, %v24

// kernel: tile.18
$region0: #{tile.18}
  #allocation0 [shape = 's32[1]{0}', space=sflag, size = 0x4, scoped, tag = 'scoped memory for tile.18']
  %s0 = inlined_call_operand.vmem [shape: f32[2], index: 0, kind: input, shape index: {}]
  %s1 = inlined_call_operand.vmem [shape: f32[3,2], index: 1, kind: output, shape index: {}]
  // Predicated region
  $region2: #{tile.18} parent=0 // pred_check
    _
  $region3: #{tile.18} parent=0 // pred_check_branch
    %3 = sbr.rel (0) target = $region5
  $region4: #{tile.18} parent=0 // pred_region
    _
  $region5: #{tile.18} parent=0 // pred_fallthru
    _
  %v4 = vld [vmem:[%s0] ss:$0 sm:$0xff]
  %5 = vst [vmem:[%s1] sm:$0xf] %v4

// kernel: mtr3_forward.1
$region0: #{mtr3_forward.1}
  #allocation0 [shape = 'u32[]', space=smem, size = 0x4, offset = 0x4, fixed_abs, tag = 'smem constant byte address 0x4 - core index']
  #allocation1 [shape = 'u32[144,128]{1,0:T(1,128)}', space=vmem, size = 0x12000, scoped, tag = 'internal scratch']
  #allocation2 [shape = 'f32[256,256]{1,0:T(8,128)}', space=vmem, size = 0x40000, scoped, tag = 'scratch operand']
  #allocation3 [shape = 'f32[1,1]{1,0:T(1,128)S(1)}', space=vmem, size = 0x200, scoped, tag = 'scoped memory for mtr3_forward.1']
  %s0 = inlined_call_operand.vmem [shape: f32[2,1,2048], index: 0, kind: input, shape index: {}]
  %s1 = inlined_call_operand.vmem [shape: f32[2,4,64], index: 1, kind: input, shape index: {}]
  %s2 = inlined_call_operand.vmem [shape: f32[4,1], index: 2, kind: input, shape index: {}]
  %s3 = inlined_call_operand.vmem [shape: f32[4,1], index: 3, kind: input, shape index: {}]
  %s4 = inlined_call_operand.vmem [shape: f32[4,1], index: 4, kind: input, shape index: {}]
  %s5 = inlined_call_operand.<no memory space> [shape: f32[1,1], index: 5, kind: input, shape index: {}]
  %s6 = inlined_call_operand.vmem [shape: f32[32,4], index: 6, kind: input, shape index: {}]
  %s7 = inlined_call_operand.vmem [shape: f32[32,1], index: 7, kind: input, shape index: {}]
  %s8 = inlined_call_operand.vmem [shape: f32[32,32], index: 8, kind: input, shape index: {}]
  %s9 = inlined_call_operand.vmem [shape: f32[32,1], index: 9, kind: input, shape index: {}]
  %s10 = inlined_call_operand.vmem [shape: f32[32,32], index: 10, kind: input, shape index: {}]
  %s11 = inlined_call_operand.vmem [shape: f32[32,1], index: 11, kind: input, shape index: {}]
  %s12 = inlined_call_operand.vmem [shape: f32[6,32], index: 12, kind: input, shape index: {}]
  %s13 = inlined_call_operand.vmem [shape: f32[6,1], index: 13, kind: input, shape index: {}]
  %s14 = inlined_call_operand.vmem [shape: f32[6,1], index: 14, kind: input, shape index: {}]
  %s15 = inlined_call_operand.vmem [shape: f32[2,4,2048], index: 15, kind: output, shape index: {0}]
  %s16 = inlined_call_operand.vmem [shape: f32[2,1,2048], index: 16, kind: output, shape index: {1}]
  %s17 = inlined_call_operand.vmem [shape: f32[2,6,64], index: 17, kind: output, shape index: {2}]
  %18 = xla_tuple %s15, %s16, %s17
  %s19 = sld [smem:[#allocation0]]
  $region113: #{mtr3_forward.1} parent=0
    _
  %s21 = ssub.s32 1, %s19
  %s22 = scalar_select 0, %s21, %s19
  %v23 = vstv %s5
  %24 = vst [vmem:[#allocation3] sm:$0x1] %v23
  loop: start=0, step=1, limit=18
  $region2: #{mtr3_forward.1} parent=0 // loop_pre_header
    _
  $region3: #{mtr3_forward.1} parent=0 // loop_header
    %s26 = sphi 0, %s30
    %p27 = scmp.ge.s32.totalorder %s26, 18
    %s33 = sphi 0, %s45
    %s34 = sphi 0, %s41
    %s35 = sphi 0, %s33
    %s36 = sphi 0, %s34
    %s37 = sphi 0, %s35
    %s38 = sphi 0, %s36
    %s50 = sphi 0, %s52
    %s53 = sphi 0, %s50
    %s54 = sphi 0, %s53
    %s70 = sphi 0, %s54
    %s76 = sphi 0, %s78
    %s79 = sphi 0, %s76
    %s80 = sphi 0, %s79
    %s96 = sphi 0, %s80
    %s100 = sphi 0, %s100
    %s102 = sphi 0, %s100
    %s103 = sphi 0, %s102
    %s117 = sphi 0, %s103
    %s121 = sphi 0, %s121
    %s123 = sphi 0, %s121
    %s124 = sphi 0, %s123
    %s138 = sphi 0, %s124
    %s142 = sphi 0, %s142
    %s144 = sphi 0, %s142
    %s145 = sphi 0, %s144
    %s159 = sphi 0, %s145
    %s163 = sphi 0, %s163
    %s165 = sphi 0, %s163
    %s166 = sphi 0, %s165
    %s180 = sphi 0, %s166
    %s184 = sphi 0, %s184
    %s186 = sphi 0, %s184
    %s187 = sphi 0, %s186
    %s201 = sphi 0, %s187
    %s205 = sphi 0, %s205
    %s207 = sphi 0, %s205
    %s208 = sphi 0, %s207
    %s222 = sphi 0, %s208
    %s226 = sphi 0, %s226
    %s228 = sphi 0, %s226
    %s229 = sphi 0, %s228
    %s243 = sphi 0, %s229
    %s247 = sphi 0, %s247
    %s249 = sphi 0, %s247
    %s250 = sphi 0, %s249
    %s264 = sphi 0, %s250
    %s268 = sphi 0, %s268
    %s270 = sphi 0, %s268
    %s271 = sphi 0, %s270
    %s285 = sphi 0, %s271
    %s289 = sphi 0, %s289
    %s291 = sphi 0, %s289
    %s292 = sphi 0, %s291
    %s306 = sphi 0, %s292
    %s310 = sphi 0, %s310
    %s312 = sphi 0, %s310
    %s313 = sphi 0, %s312
    %s327 = sphi 0, %s313
    %s331 = sphi 0, %s331
    %s333 = sphi 0, %s331
    %s334 = sphi 0, %s333
    %s348 = sphi 0, %s334
    %s352 = sphi 0, %s352
    %s354 = sphi 0, %s352
    %s355 = sphi 0, %s354
    %s369 = sphi 0, %s355
    %s377 = sphi 0, %s379
    %s380 = sphi 0, %s377
    %s381 = sphi 0, %s380
    %s397 = sphi 0, %s381
    %s405 = sphi 0, %s407
    %s408 = sphi 0, %s405
    %s409 = sphi 0, %s408
    %s425 = sphi 0, %s409
    %s431 = sphi 0, %s433
    %s434 = sphi 0, %s431
    %s435 = sphi 0, %s434
    %s451 = sphi 0, %s435
  $region4: #{mtr3_forward.1} parent=0 // loop_header_branch
    %29 = sbr.rel (%p27) target = $region8
  $region5: #{mtr3_forward.1} parent=0 // loop_body
    %s31 = ssub.s32 %s26, 1
    %s32 = ssub.s32 %s26, 2
    %s39 = sadd.s32 1, %s34
    %p40 = scmp.ge.s32.totalorder %s39, 8
    %s41 = scalar_select %p40, 0, %s39
    %s42 = sadd.s32 1, %s33
    %s43 = scalar_select %p40, %s42, %s33
    %p44 = scmp.ge.s32.totalorder %s43, 2
    %s45 = scalar_select %p44, 0, %s43
    %s46 = ssub.s32 %s33, %s45
    %s47 = ssub.s32 %s34, %s41
    %s48 = sor.u32 %s46, %s47
    %p49 = scmp.eq.s32.totalorder %s48, 0
    %s51 = sadd.s32 %s50, 1
    %s52 = scalar_select %p49, %s50, %s51
    %p55 = pneg %p49
    %p56 = scmp.eq.s32.totalorder %s26, 15
    %p57 = por %p55, %p56
    %p58 = scmp.ne.s32.totalorder %s50, %s53
    %p59 = scmp.eq.s32.totalorder %s26, 0
    %p60 = por %p58, %p59
    %p61 = scmp.ne.s32.totalorder %s50, %s53
    %p62 = scmp.eq.s32.totalorder %s31, 15
    %p63 = por %p61, %p62
    %p64 = scmp.ne.s32.totalorder %s53, %s54
    %p65 = scmp.eq.s32.totalorder %s31, 0
    %p66 = por %p64, %p65
    %p67 = scmp.ne.s32.totalorder %s53, %s54
    %p68 = scmp.eq.s32.totalorder %s32, 15
    %p69 = por %p67, %p68
    %p71 = scmp.ne.s32.totalorder %s54, %s70
    %p72 = scmp.eq.s32.totalorder %s32, 0
    %p73 = por %p71, %p72
    %s74 = ssub.s32 %s33, %s45
    %p75 = scmp.eq.s32.totalorder %s74, 0
    %s77 = sadd.s32 %s76, 1
    %s78 = scalar_select %p75, %s76, %s77
    %p81 = pneg %p75
    %p82 = scmp.eq.s32.totalorder %s26, 15
    %p83 = por %p81, %p82
    %p84 = scmp.ne.s32.totalorder %s76, %s79
    %p85 = scmp.eq.s32.totalorder %s26, 0
    %p86 = por %p84, %p85
    %p87 = scmp.ne.s32.totalorder %s76, %s79
    %p88 = scmp.eq.s32.totalorder %s31, 15
    %p89 = por %p87, %p88
    %p90 = scmp.ne.s32.totalorder %s79, %s80
    %p91 = scmp.eq.s32.totalorder %s31, 0
    %p92 = por %p90, %p91
    %p93 = scmp.ne.s32.totalorder %s79, %s80
    %p94 = scmp.eq.s32.totalorder %s32, 15
    %p95 = por %p93, %p94
    %p97 = scmp.ne.s32.totalorder %s80, %s96
    %p98 = scmp.eq.s32.totalorder %s32, 0
    %p99 = por %p97, %p98
    %s101 = sadd.s32 %s100, 1
    %p104 = scmp.eq.s32.totalorder %s26, 15
    %p105 = scmp.ne.s32.totalorder %s100, %s102
    %p106 = scmp.eq.s32.totalorder %s26, 0
    %p107 = por %p105, %p106
    %p108 = scmp.ne.s32.totalorder %s100, %s102
    %p109 = scmp.eq.s32.totalorder %s31, 15
    %p110 = por %p108, %p109
    %p111 = scmp.ne.s32.totalorder %s102, %s103
    %p112 = scmp.eq.s32.totalorder %s31, 0
    %p113 = por %p111, %p112
    %p114 = scmp.ne.s32.totalorder %s102, %s103
    %p115 = scmp.eq.s32.totalorder %s32, 15
    %p116 = por %p114, %p115
    %p118 = scmp.ne.s32.totalorder %s103, %s117
    %p119 = scmp.eq.s32.totalorder %s32, 0
    %p120 = por %p118, %p119
    %s122 = sadd.s32 %s121, 1
    %p125 = scmp.eq.s32.totalorder %s26, 15
    %p126 = scmp.ne.s32.totalorder %s121, %s123
    %p127 = scmp.eq.s32.totalorder %s26, 0
    %p128 = por %p126, %p127
    %p129 = scmp.ne.s32.totalorder %s121, %s123
    %p130 = scmp.eq.s32.totalorder %s31, 15
    %p131 = por %p129, %p130
    %p132 = scmp.ne.s32.totalorder %s123, %s124
    %p133 = scmp.eq.s32.totalorder %s31, 0
    %p134 = por %p132, %p133
    %p135 = scmp.ne.s32.totalorder %s123, %s124
    %p136 = scmp.eq.s32.totalorder %s32, 15
    %p137 = por %p135, %p136
    %p139 = scmp.ne.s32.totalorder %s124, %s138
    %p140 = scmp.eq.s32.totalorder %s32, 0
    %p141 = por %p139, %p140
    %s143 = sadd.s32 %s142, 1
    %p146 = scmp.eq.s32.totalorder %s26, 15
    %p147 = scmp.ne.s32.totalorder %s142, %s144
    %p148 = scmp.eq.s32.totalorder %s26, 0
    %p149 = por %p147, %p148
    %p150 = scmp.ne.s32.totalorder %s142, %s144
    %p151 = scmp.eq.s32.totalorder %s31, 15
    %p152 = por %p150, %p151
    %p153 = scmp.ne.s32.totalorder %s144, %s145
    %p154 = scmp.eq.s32.totalorder %s31, 0
    %p155 = por %p153, %p154
    %p156 = scmp.ne.s32.totalorder %s144, %s145
    %p157 = scmp.eq.s32.totalorder %s32, 15
    %p158 = por %p156, %p157
    %p160 = scmp.ne.s32.totalorder %s145, %s159
    %p161 = scmp.eq.s32.totalorder %s32, 0
    %p162 = por %p160, %p161
    %s164 = sadd.s32 %s163, 1
    %p167 = scmp.eq.s32.totalorder %s26, 15
    %p168 = scmp.ne.s32.totalorder %s163, %s165
    %p169 = scmp.eq.s32.totalorder %s26, 0
    %p170 = por %p168, %p169
    %p171 = scmp.ne.s32.totalorder %s163, %s165
    %p172 = scmp.eq.s32.totalorder %s31, 15
    %p173 = por %p171, %p172
    %p174 = scmp.ne.s32.totalorder %s165, %s166
    %p175 = scmp.eq.s32.totalorder %s31, 0
    %p176 = por %p174, %p175
    %p177 = scmp.ne.s32.totalorder %s165, %s166
    %p178 = scmp.eq.s32.totalorder %s32, 15
    %p179 = por %p177, %p178
    %p181 = scmp.ne.s32.totalorder %s166, %s180
    %p182 = scmp.eq.s32.totalorder %s32, 0
    %p183 = por %p181, %p182
    %s185 = sadd.s32 %s184, 1
    %p188 = scmp.eq.s32.totalorder %s26, 15
    %p189 = scmp.ne.s32.totalorder %s184, %s186
    %p190 = scmp.eq.s32.totalorder %s26, 0
    %p191 = por %p189, %p190
    %p192 = scmp.ne.s32.totalorder %s184, %s186
    %p193 = scmp.eq.s32.totalorder %s31, 15
    %p194 = por %p192, %p193
    %p195 = scmp.ne.s32.totalorder %s186, %s187
    %p196 = scmp.eq.s32.totalorder %s31, 0
    %p197 = por %p195, %p196
    %p198 = scmp.ne.s32.totalorder %s186, %s187
    %p199 = scmp.eq.s32.totalorder %s32, 15
    %p200 = por %p198, %p199
    %p202 = scmp.ne.s32.totalorder %s187, %s201
    %p203 = scmp.eq.s32.totalorder %s32, 0
    %p204 = por %p202, %p203
    %s206 = sadd.s32 %s205, 1
    %p209 = scmp.eq.s32.totalorder %s26, 15
    %p210 = scmp.ne.s32.totalorder %s205, %s207
    %p211 = scmp.eq.s32.totalorder %s26, 0
    %p212 = por %p210, %p211
    %p213 = scmp.ne.s32.totalorder %s205, %s207
    %p214 = scmp.eq.s32.totalorder %s31, 15
    %p215 = por %p213, %p214
    %p216 = scmp.ne.s32.totalorder %s207, %s208
    %p217 = scmp.eq.s32.totalorder %s31, 0
    %p218 = por %p216, %p217
    %p219 = scmp.ne.s32.totalorder %s207, %s208
    %p220 = scmp.eq.s32.totalorder %s32, 15
    %p221 = por %p219, %p220
    %p223 = scmp.ne.s32.totalorder %s208, %s222
    %p224 = scmp.eq.s32.totalorder %s32, 0
    %p225 = por %p223, %p224
    %s227 = sadd.s32 %s226, 1
    %p230 = scmp.eq.s32.totalorder %s26, 15
    %p231 = scmp.ne.s32.totalorder %s226, %s228
    %p232 = scmp.eq.s32.totalorder %s26, 0
    %p233 = por %p231, %p232
    %p234 = scmp.ne.s32.totalorder %s226, %s228
    %p235 = scmp.eq.s32.totalorder %s31, 15
    %p236 = por %p234, %p235
    %p237 = scmp.ne.s32.totalorder %s228, %s229
    %p238 = scmp.eq.s32.totalorder %s31, 0
    %p239 = por %p237, %p238
    %p240 = scmp.ne.s32.totalorder %s228, %s229
    %p241 = scmp.eq.s32.totalorder %s32, 15
    %p242 = por %p240, %p241
    %p244 = scmp.ne.s32.totalorder %s229, %s243
    %p245 = scmp.eq.s32.totalorder %s32, 0
    %p246 = por %p244, %p245
    %s248 = sadd.s32 %s247, 1
    %p251 = scmp.eq.s32.totalorder %s26, 15
    %p252 = scmp.ne.s32.totalorder %s247, %s249
    %p253 = scmp.eq.s32.totalorder %s26, 0
    %p254 = por %p252, %p253
    %p255 = scmp.ne.s32.totalorder %s247, %s249
    %p256 = scmp.eq.s32.totalorder %s31, 15
    %p257 = por %p255, %p256
    %p258 = scmp.ne.s32.totalorder %s249, %s250
    %p259 = scmp.eq.s32.totalorder %s31, 0
    %p260 = por %p258, %p259
    %p261 = scmp.ne.s32.totalorder %s249, %s250
    %p262 = scmp.eq.s32.totalorder %s32, 15
    %p263 = por %p261, %p262
    %p265 = scmp.ne.s32.totalorder %s250, %s264
    %p266 = scmp.eq.s32.totalorder %s32, 0
    %p267 = por %p265, %p266
    %s269 = sadd.s32 %s268, 1
    %p272 = scmp.eq.s32.totalorder %s26, 15
    %p273 = scmp.ne.s32.totalorder %s268, %s270
    %p274 = scmp.eq.s32.totalorder %s26, 0
    %p275 = por %p273, %p274
    %p276 = scmp.ne.s32.totalorder %s268, %s270
    %p277 = scmp.eq.s32.totalorder %s31, 15
    %p278 = por %p276, %p277
    %p279 = scmp.ne.s32.totalorder %s270, %s271
    %p280 = scmp.eq.s32.totalorder %s31, 0
    %p281 = por %p279, %p280
    %p282 = scmp.ne.s32.totalorder %s270, %s271
    %p283 = scmp.eq.s32.totalorder %s32, 15
    %p284 = por %p282, %p283
    %p286 = scmp.ne.s32.totalorder %s271, %s285
    %p287 = scmp.eq.s32.totalorder %s32, 0
    %p288 = por %p286, %p287
    %s290 = sadd.s32 %s289, 1
    %p293 = scmp.eq.s32.totalorder %s26, 15
    %p294 = scmp.ne.s32.totalorder %s289, %s291
    %p295 = scmp.eq.s32.totalorder %s26, 0
    %p296 = por %p294, %p295
    %p297 = scmp.ne.s32.totalorder %s289, %s291
    %p298 = scmp.eq.s32.totalorder %s31, 15
    %p299 = por %p297, %p298
    %p300 = scmp.ne.s32.totalorder %s291, %s292
    %p301 = scmp.eq.s32.totalorder %s31, 0
    %p302 = por %p300, %p301
    %p303 = scmp.ne.s32.totalorder %s291, %s292
    %p304 = scmp.eq.s32.totalorder %s32, 15
    %p305 = por %p303, %p304
    %p307 = scmp.ne.s32.totalorder %s292, %s306
    %p308 = scmp.eq.s32.totalorder %s32, 0
    %p309 = por %p307, %p308
    %s311 = sadd.s32 %s310, 1
    %p314 = scmp.eq.s32.totalorder %s26, 15
    %p315 = scmp.ne.s32.totalorder %s310, %s312
    %p316 = scmp.eq.s32.totalorder %s26, 0
    %p317 = por %p315, %p316
    %p318 = scmp.ne.s32.totalorder %s310, %s312
    %p319 = scmp.eq.s32.totalorder %s31, 15
    %p320 = por %p318, %p319
    %p321 = scmp.ne.s32.totalorder %s312, %s313
    %p322 = scmp.eq.s32.totalorder %s31, 0
    %p323 = por %p321, %p322
    %p324 = scmp.ne.s32.totalorder %s312, %s313
    %p325 = scmp.eq.s32.totalorder %s32, 15
    %p326 = por %p324, %p325
    %p328 = scmp.ne.s32.totalorder %s313, %s327
    %p329 = scmp.eq.s32.totalorder %s32, 0
    %p330 = por %p328, %p329
    %s332 = sadd.s32 %s331, 1
    %p335 = scmp.eq.s32.totalorder %s26, 15
    %p336 = scmp.ne.s32.totalorder %s331, %s333
    %p337 = scmp.eq.s32.totalorder %s26, 0
    %p338 = por %p336, %p337
    %p339 = scmp.ne.s32.totalorder %s331, %s333
    %p340 = scmp.eq.s32.totalorder %s31, 15
    %p341 = por %p339, %p340
    %p342 = scmp.ne.s32.totalorder %s333, %s334
    %p343 = scmp.eq.s32.totalorder %s31, 0
    %p344 = por %p342, %p343
    %p345 = scmp.ne.s32.totalorder %s333, %s334
    %p346 = scmp.eq.s32.totalorder %s32, 15
    %p347 = por %p345, %p346
    %p349 = scmp.ne.s32.totalorder %s334, %s348
    %p350 = scmp.eq.s32.totalorder %s32, 0
    %p351 = por %p349, %p350
    %s353 = sadd.s32 %s352, 1
    %p356 = scmp.eq.s32.totalorder %s26, 15
    %p357 = scmp.ne.s32.totalorder %s352, %s354
    %p358 = scmp.eq.s32.totalorder %s26, 0
    %p359 = por %p357, %p358
    %p360 = scmp.ne.s32.totalorder %s352, %s354
    %p361 = scmp.eq.s32.totalorder %s31, 15
    %p362 = por %p360, %p361
    %p363 = scmp.ne.s32.totalorder %s354, %s355
    %p364 = scmp.eq.s32.totalorder %s31, 0
    %p365 = por %p363, %p364
    %p366 = scmp.ne.s32.totalorder %s354, %s355
    %p367 = scmp.eq.s32.totalorder %s32, 15
    %p368 = por %p366, %p367
    %p370 = scmp.ne.s32.totalorder %s355, %s369
    %p371 = scmp.eq.s32.totalorder %s32, 0
    %p372 = por %p370, %p371
    %s373 = ssub.s32 %s33, %s45
    %s374 = ssub.s32 %s34, %s41
    %s375 = sor.u32 %s373, %s374
    %p376 = scmp.eq.s32.totalorder %s375, 0
    %s378 = sadd.s32 %s377, 1
    %s379 = scalar_select %p376, %s377, %s378
    %p382 = pneg %p376
    %p383 = scmp.eq.s32.totalorder %s26, 15
    %p384 = por %p382, %p383
    %p385 = scmp.ne.s32.totalorder %s377, %s380
    %p386 = scmp.eq.s32.totalorder %s26, 0
    %p387 = por %p385, %p386
    %p388 = scmp.ne.s32.totalorder %s377, %s380
    %p389 = scmp.eq.s32.totalorder %s31, 15
    %p390 = por %p388, %p389
    %p391 = scmp.ne.s32.totalorder %s380, %s381
    %p392 = scmp.eq.s32.totalorder %s31, 0
    %p393 = por %p391, %p392
    %p394 = scmp.ne.s32.totalorder %s380, %s381
    %p395 = scmp.eq.s32.totalorder %s32, 15
    %p396 = por %p394, %p395
    %p398 = scmp.ne.s32.totalorder %s381, %s397
    %p399 = scmp.eq.s32.totalorder %s32, 0
    %p400 = por %p398, %p399
    %s401 = ssub.s32 %s33, %s45
    %s402 = ssub.s32 %s34, %s41
    %s403 = sor.u32 %s401, %s402
    %p404 = scmp.eq.s32.totalorder %s403, 0
    %s406 = sadd.s32 %s405, 1
    %s407 = scalar_select %p404, %s405, %s406
    %p410 = pneg %p404
    %p411 = scmp.eq.s32.totalorder %s26, 15
    %p412 = por %p410, %p411
    %p413 = scmp.ne.s32.totalorder %s405, %s408
    %p414 = scmp.eq.s32.totalorder %s26, 0
    %p415 = por %p413, %p414
    %p416 = scmp.ne.s32.totalorder %s405, %s408
    %p417 = scmp.eq.s32.totalorder %s31, 15
    %p418 = por %p416, %p417
    %p419 = scmp.ne.s32.totalorder %s408, %s409
    %p420 = scmp.eq.s32.totalorder %s31, 0
    %p421 = por %p419, %p420
    %p422 = scmp.ne.s32.totalorder %s408, %s409
    %p423 = scmp.eq.s32.totalorder %s32, 15
    %p424 = por %p422, %p423
    %p426 = scmp.ne.s32.totalorder %s409, %s425
    %p427 = scmp.eq.s32.totalorder %s32, 0
    %p428 = por %p426, %p427
    %s429 = ssub.s32 %s33, %s45
    %p430 = scmp.eq.s32.totalorder %s429, 0
    %s432 = sadd.s32 %s431, 1
    %s433 = scalar_select %p430, %s431, %s432
    %p436 = pneg %p430
    %p437 = scmp.eq.s32.totalorder %s26, 15
    %p438 = por %p436, %p437
    %p439 = scmp.ne.s32.totalorder %s431, %s434
    %p440 = scmp.eq.s32.totalorder %s26, 0
    %p441 = por %p439, %p440
    %p442 = scmp.ne.s32.totalorder %s431, %s434
    %p443 = scmp.eq.s32.totalorder %s31, 15
    %p444 = por %p442, %p443
    %p445 = scmp.ne.s32.totalorder %s434, %s435
    %p446 = scmp.eq.s32.totalorder %s31, 0
    %p447 = por %p445, %p446
    %p448 = scmp.ne.s32.totalorder %s434, %s435
    %p449 = scmp.eq.s32.totalorder %s32, 15
    %p450 = por %p448, %p449
    %p452 = scmp.ne.s32.totalorder %s435, %s451
    %p453 = scmp.eq.s32.totalorder %s32, 0
    %p454 = por %p452, %p453
    %p455 = scmp.le.s32.totalorder 1, %s26
    %p456 = scmp.lt.s32.totalorder %s26, 17
    %p457 = pnand %p455, %p456
    %p458 = pneg %p457
    // Predicated region
    $region9: #{mtr3_forward.1} parent=5 // pred_check
      _
    $region10: #{mtr3_forward.1} parent=5 // pred_check_branch
      %460 = sbr.rel (%p457) target = $region12
    $region11: #{mtr3_forward.1} parent=5 // pred_region
      %s461 = ssub.s32 %s26, 1
      // Predicated region
      $region13: #{mtr3_forward.1} parent=11 // pred_check
        %p462 = pneg %p113
      $region14: #{mtr3_forward.1} parent=11 // pred_check_branch
        %464 = sbr.rel (%p462) target = $region16
      $region15: #{mtr3_forward.1} parent=11 // pred_region
        _
      $region16: #{mtr3_forward.1} parent=11 // pred_fallthru
        _
      // Predicated region
      $region17: #{mtr3_forward.1} parent=11 // pred_check
        %p465 = pneg %p134
      $region18: #{mtr3_forward.1} parent=11 // pred_check_branch
        %467 = sbr.rel (%p465) target = $region20
      $region19: #{mtr3_forward.1} parent=11 // pred_region
        _
      $region20: #{mtr3_forward.1} parent=11 // pred_fallthru
        _
      // Predicated region
      $region21: #{mtr3_forward.1} parent=11 // pred_check
        %p468 = pneg %p155
      $region22: #{mtr3_forward.1} parent=11 // pred_check_branch
        %470 = sbr.rel (%p468) target = $region24
      $region23: #{mtr3_forward.1} parent=11 // pred_region
        _
      $region24: #{mtr3_forward.1} parent=11 // pred_fallthru
        _
      // Predicated region
      $region25: #{mtr3_forward.1} parent=11 // pred_check
        %p471 = pneg %p176
      $region26: #{mtr3_forward.1} parent=11 // pred_check_branch
        %473 = sbr.rel (%p471) target = $region28
      $region27: #{mtr3_forward.1} parent=11 // pred_region
        _
      $region28: #{mtr3_forward.1} parent=11 // pred_fallthru
        _
      // Predicated region
      $region29: #{mtr3_forward.1} parent=11 // pred_check
        %p474 = pneg %p197
      $region30: #{mtr3_forward.1} parent=11 // pred_check_branch
        %476 = sbr.rel (%p474) target = $region32
      $region31: #{mtr3_forward.1} parent=11 // pred_region
        _
      $region32: #{mtr3_forward.1} parent=11 // pred_fallthru
        _
      // Predicated region
      $region33: #{mtr3_forward.1} parent=11 // pred_check
        %p477 = pneg %p218
      $region34: #{mtr3_forward.1} parent=11 // pred_check_branch
        %479 = sbr.rel (%p477) target = $region36
      $region35: #{mtr3_forward.1} parent=11 // pred_region
        _
      $region36: #{mtr3_forward.1} parent=11 // pred_fallthru
        _
      // Predicated region
      $region37: #{mtr3_forward.1} parent=11 // pred_check
        %p480 = pneg %p239
      $region38: #{mtr3_forward.1} parent=11 // pred_check_branch
        %482 = sbr.rel (%p480) target = $region40
      $region39: #{mtr3_forward.1} parent=11 // pred_region
        _
      $region40: #{mtr3_forward.1} parent=11 // pred_fallthru
        _
      // Predicated region
      $region41: #{mtr3_forward.1} parent=11 // pred_check
        %p483 = pneg %p260
      $region42: #{mtr3_forward.1} parent=11 // pred_check_branch
        %485 = sbr.rel (%p483) target = $region44
      $region43: #{mtr3_forward.1} parent=11 // pred_region
        _
      $region44: #{mtr3_forward.1} parent=11 // pred_fallthru
        _
      // Predicated region
      $region45: #{mtr3_forward.1} parent=11 // pred_check
        %p486 = pneg %p281
      $region46: #{mtr3_forward.1} parent=11 // pred_check_branch
        %488 = sbr.rel (%p486) target = $region48
      $region47: #{mtr3_forward.1} parent=11 // pred_region
        _
      $region48: #{mtr3_forward.1} parent=11 // pred_fallthru
        _
      // Predicated region
      $region49: #{mtr3_forward.1} parent=11 // pred_check
        %p489 = pneg %p302
      $region50: #{mtr3_forward.1} parent=11 // pred_check_branch
        %491 = sbr.rel (%p489) target = $region52
      $region51: #{mtr3_forward.1} parent=11 // pred_region
        _
      $region52: #{mtr3_forward.1} parent=11 // pred_fallthru
        _
      // Predicated region
      $region53: #{mtr3_forward.1} parent=11 // pred_check
        %p492 = pneg %p323
      $region54: #{mtr3_forward.1} parent=11 // pred_check_branch
        %494 = sbr.rel (%p492) target = $region56
      $region55: #{mtr3_forward.1} parent=11 // pred_region
        _
      $region56: #{mtr3_forward.1} parent=11 // pred_fallthru
        _
      // Predicated region
      $region57: #{mtr3_forward.1} parent=11 // pred_check
        %p495 = pneg %p344
      $region58: #{mtr3_forward.1} parent=11 // pred_check_branch
        %497 = sbr.rel (%p495) target = $region60
      $region59: #{mtr3_forward.1} parent=11 // pred_region
        _
      $region60: #{mtr3_forward.1} parent=11 // pred_fallthru
        _
      // Predicated region
      $region61: #{mtr3_forward.1} parent=11 // pred_check
        %p498 = pneg %p365
      $region62: #{mtr3_forward.1} parent=11 // pred_check_branch
        %500 = sbr.rel (%p498) target = $region64
      $region63: #{mtr3_forward.1} parent=11 // pred_region
        _
      $region64: #{mtr3_forward.1} parent=11 // pred_fallthru
        _
    $region12: #{mtr3_forward.1} parent=5 // pred_fallthru
      _
    %p501 = scmp.lt.s32.totalorder %s26, 16
    // Predicated region
    $region65: #{mtr3_forward.1} parent=5 // pred_check
      %p502 = pneg %p501
    $region66: #{mtr3_forward.1} parent=5 // pred_check_branch
      %504 = sbr.rel (%p502) target = $region68
    $region67: #{mtr3_forward.1} parent=5 // pred_region
      // Predicated region
      $region69: #{mtr3_forward.1} parent=67 // pred_check
        %p505 = pneg %p60
      $region70: #{mtr3_forward.1} parent=67 // pred_check_branch
        %507 = sbr.rel (%p505) target = $region72
      $region71: #{mtr3_forward.1} parent=67 // pred_region
        %s508 = smul.u32 2, %s34
        %p509 = scmp.lt.s32.totalorder %s33, 1
        %s510 = scalar_select %p509, %s33, 1
        %p511 = scmp.lt.s32.totalorder %s508, 15
        %s512 = scalar_select %p511, %s508, 15
        %s513 = smul.addr %s510, 16
        %s514 = sadd.s32 %s512, %s513
        %s515 = scalar_lea.vmem %s0, %s514
        %s516 = smul.u32 2, %s34
      $region72: #{mtr3_forward.1} parent=67 // pred_fallthru
        _
      // Predicated region
      $region73: #{mtr3_forward.1} parent=67 // pred_check
        %p517 = pneg %p86
      $region74: #{mtr3_forward.1} parent=67 // pred_check_branch
        %519 = sbr.rel (%p517) target = $region76
      $region75: #{mtr3_forward.1} parent=67 // pred_region
        %p520 = scmp.lt.s32.totalorder %s33, 1
        %s521 = scalar_select %p520, %s33, 1
        %s522 = smul.addr %s521, 4
        %s523 = scalar_lea.vmem %s1, %s522
      $region76: #{mtr3_forward.1} parent=67 // pred_fallthru
        _
    $region68: #{mtr3_forward.1} parent=5 // pred_fallthru
      _
    %p524 = scmp.le.s32.totalorder 1, %s26
    %p525 = scmp.lt.s32.totalorder %s26, 17
    %p526 = pnand %p524, %p525
    %p527 = pneg %p526
    // Predicated region
    $region77: #{mtr3_forward.1} parent=5 // pred_check
      _
    $region78: #{mtr3_forward.1} parent=5 // pred_check_branch
      %529 = sbr.rel (%p526) target = $region80
    $region79: #{mtr3_forward.1} parent=5 // pred_region
      %s530 = ssub.s32 %s26, 1
      %s531 = smul.u32 2, %s36
      %p532 = scmp.lt.s32.totalorder %s35, 1
      %s533 = scalar_select %p532, %s35, 1
      %p534 = scmp.lt.s32.totalorder %s531, 15
      %s535 = scalar_select %p534, %s531, 15
      %s536 = smul.addr %s533, 16
      %s537 = sadd.s32 %s535, %s536
      %s538 = scalar_lea.vmem %s0, %s537
      %p539 = pneg %p66
      %p540 = pneg %p63
      %p541 = scmp.lt.s32.totalorder %s35, 1
      %s542 = scalar_select %p541, %s35, 1
      %s543 = smul.addr %s542, 4
      %s544 = scalar_lea.vmem %s1, %s543
      %p545 = pneg %p92
      %p546 = pneg %p89
      %p547 = pneg %p113
      %p548 = pneg %p110
      %p549 = pneg %p134
      %p550 = pneg %p131
      %p551 = pneg %p155
      %p552 = pneg %p152
      %p553 = pneg %p176
      %p554 = pneg %p173
      %p555 = pneg %p197
      %p556 = pneg %p194
      %p557 = pneg %p218
      %p558 = pneg %p215
      %p559 = pneg %p239
      %p560 = pneg %p236
      %p561 = pneg %p260
      %p562 = pneg %p257
      %p563 = pneg %p281
      %p564 = pneg %p278
      %p565 = pneg %p302
      %p566 = pneg %p299
      %p567 = pneg %p323
      %p568 = pneg %p320
      %p569 = pneg %p344
      %p570 = pneg %p341
      %p571 = pneg %p365
      %p572 = pneg %p362
      %p573 = pneg %p393
      %p574 = pneg %p390
      %s575 = smul.u32 2, %s36
      %p576 = scmp.lt.s32.totalorder %s35, 1
      %s577 = scalar_select %p576, %s35, 1
      %p578 = scmp.lt.s32.totalorder %s575, 15
      %s579 = scalar_select %p578, %s575, 15
      %s580 = smul.addr %s577, 16
      %s581 = sadd.s32 %s579, %s580
      %s582 = smul.addr %s581, 4
      %s583 = scalar_lea.vmem %s15, %s582
      %p584 = pneg %p421
      %p585 = pneg %p418
      %s586 = smul.u32 2, %s36
      %p587 = scmp.lt.s32.totalorder %s35, 1
      %s588 = scalar_select %p587, %s35, 1
      %p589 = scmp.lt.s32.totalorder %s586, 15
      %s590 = scalar_select %p589, %s586, 15
      %s591 = smul.addr %s588, 16
      %s592 = sadd.s32 %s590, %s591
      %s593 = scalar_lea.vmem %s16, %s592
      %p594 = pneg %p447
      %p595 = pneg %p444
      %p596 = scmp.lt.s32.totalorder %s35, 1
      %s597 = scalar_select %p596, %s35, 1
      %s598 = smul.addr %s597, 8
      %s599 = scalar_lea.vmem %s17, %s598
      %s600 = smul.u32 2, %s36
      %p601 = scmp.lt.s32.totalorder %s35, 1
      %s602 = scalar_select %p601, %s35, 1
      %p603 = scmp.lt.s32.totalorder %s600, 15
      %s604 = scalar_select %p603, %s600, 15
      %s605 = smul.addr %s602, 16
      %s606 = sadd.s32 %s604, %s605
      %s607 = scalar_lea.vmem %s0, %s606
      %s608 = smul.u32 2, %s36
      %p609 = scmp.lt.s32.totalorder %s35, 1
      %s610 = scalar_select %p609, %s35, 1
      %s611 = smul.addr %s610, 4
      %s612 = scalar_lea.vmem %s1, %s611
      %s613 = smul.u32 2, %s36
      %p614 = scmp.lt.s32.totalorder %s35, 1
      %s615 = scalar_select %p614, %s35, 1
      %p616 = scmp.lt.s32.totalorder %s613, 15
      %s617 = scalar_select %p616, %s613, 15
      %s618 = smul.addr %s615, 16
      %s619 = sadd.s32 %s617, %s618
      %s620 = smul.addr %s619, 4
      %s621 = scalar_lea.vmem %s15, %s620
      %s622 = smul.u32 2, %s36
      %s623 = smul.u32 2, %s36
      %p624 = scmp.lt.s32.totalorder %s35, 1
      %s625 = scalar_select %p624, %s35, 1
      %p626 = scmp.lt.s32.totalorder %s623, 15
      %s627 = scalar_select %p626, %s623, 15
      %s628 = smul.addr %s625, 16
      %s629 = sadd.s32 %s627, %s628
      %s630 = scalar_lea.vmem %s16, %s629
      %s631 = smul.u32 2, %s36
      %p632 = scmp.lt.s32.totalorder %s35, 1
      %s633 = scalar_select %p632, %s35, 1
      %s634 = smul.addr %s633, 8
      %s635 = scalar_lea.vmem %s17, %s634
      %v636 = vld [vmem:[%s607] sm:$0x3]
      %v637 = vld [vmem:[%s2] sm:$0xf]
      %639 = vset.pattern.permute.xlu0 0
      %640 = vperm.xlu0 %639, %v637
      %v641 = vpop.permute.xlu0 %640
      %v644 = vlaneseq
      %v645 = vshrl.u32 %v644, 7
      %v646 = vsub.s32 0, %v645
      %v647 = vrot.slane %v636, %v646
      %v648 = vlaneseq
      %v649 = vshrl.u32 %v648, 7
      %v650 = vsub.s32 1, %v649
      %v651 = vrot.slane %v636, %v650
      %v654 = vmul.f32 %v641, %v647
      %v655 = vmul.f32 %v641, %v651
      %v656 = vld [vmem:[%s3] sm:$0xf]
      %658 = vset.pattern.permute.xlu0 0
      %659 = vperm.xlu0 %658, %v656
      %v660 = vpop.permute.xlu0 %659
      %v662 = vadd.f32 %v654, %v660
      %v663 = vadd.f32 %v655, %v660
      %v664 = vmax.f32 %v662, 0.0
      %v665 = vmax.f32 %v663, 0.0
      %v668 = vcombine.low %v664, %v665
      %670 = vst [vmem:[%s621] sm:$0xff] %v668
      %v671 = vld [vmem:[%s4] sm:$0xf]
      %673 = vset.pattern.permute.xlu0 0
      %674 = vperm.xlu0 %673, %v671
      %v675 = vpop.permute.xlu0 %674
      %v677 = vmul.f32 %v664, %v675
      %v678 = vmul.f32 %v665, %v675
      %vm679 = vcmask 1043456
      %v680 = vsel %vm679, %v677, 0.0
      %v681 = vrot.slane %v680, 4
      %v682 = vadd.f32 %v680, %v681
      %v683 = vrot.slane %v682, 2
      %v684 = vadd.f32 %v682, %v683
      %v685 = vrot.slane %v684, 1
      %v686 = vadd.f32 %v684, %v685
      %v687 = vsel %vm679, %v678, 0.0
      %v688 = vrot.slane %v687, 4
      %v689 = vadd.f32 %v687, %v688
      %v690 = vrot.slane %v689, 2
      %v691 = vadd.f32 %v689, %v690
      %v692 = vrot.slane %v691, 1
      %v693 = vadd.f32 %v691, %v692
      %v694 = vld [vmem:[#allocation3] sm:$0x1]
      %696 = vset.pattern.permute.xlu0 0
      %697 = vperm.xlu0 %696, %v694
      %v698 = vpop.permute.xlu0 %697
      %v700 = vlaneseq
      %v701 = vshrl.u32 %v700, 7
      %v702 = vsub.s32 0, %v701
      %v703 = vrot.slane %v698, %v702
      %v704 = vadd.f32 %v686, %v703
      %v705 = vadd.f32 %v693, %v703
      %v706 = vsub.f32 0.0, %v704
      %v707 = vsub.f32 0.0, %v705
      %v708 = vmul.f32 %v706, 1.442695
      %v709 = vpow.pop %v708
      %v710 = vmul.f32 %v707, 1.442695
      %v711 = vpow.pop %v710
      %v712 = vadd.f32 %v709, 1.0
      %v713 = vadd.f32 %v711, 1.0
      %v714 = vrcp.pop %v712
      %v715 = vmul.f32 1.0, %v714
      %v716 = vrcp.pop %v713
      %v717 = vmul.f32 1.0, %v716
      %v720 = vcombine.low %v715, %v717
      %v722 = vunpack.c.l.s4 1966171168
      %v723 = vunpack.c.0.s8 %v722
      %v724 = vlaneseq
      %v725 = vshrl.u32 %v724, 7
      %v726 = vsub.s32 %v723, %v725
      %v727 = vrot.slane %v720, %v726
      %v729 = vunpack.c.l.s4 1966171168
      %v730 = vunpack.c.0.s8 %v729
      %v731 = vlaneseq
      %v732 = vshrl.u32 %v731, 7
      %v733 = vsub.s32 %v730, %v732
      %v734 = vrot.slane %v727, %v733
      %v736 = vlaneseq
      %vm737 = vcmp.ge.s32.totalorder %v736, 0
      %vm738 = vcmp.lt.s32.totalorder %v736, 256
      %vm739 = vmand %vm737, %vm738
      %740 = vst.msk [vmem:[%s630] sm:$0x3] %vm739, %v734
      %v741 = vld [vmem:[%s6] sm:$0xff]
      %v742 = vld [vmem:[%s6 + $0x8] sm:$0xff]
      %v743 = vld [vmem:[%s6 + $0x10] sm:$0xff]
      %v744 = vld [vmem:[%s6 + $0x18] sm:$0xff]
      %746 = vset.pattern.permute.xlu0 0
      %747 = vperm.xlu0 %746, %v741
      %v748 = vpop.permute.xlu0 %747
      %751 = vset.pattern.permute.xlu0 0
      %752 = vperm.xlu0 %751, %v742
      %v753 = vpop.permute.xlu0 %752
      %756 = vset.pattern.permute.xlu0 0
      %757 = vperm.xlu0 %756, %v743
      %v758 = vpop.permute.xlu0 %757
      %761 = vset.pattern.permute.xlu0 0
      %762 = vperm.xlu0 %761, %v744
      %v763 = vpop.permute.xlu0 %762
      %v765 = vlaneseq
      %v766 = vshrl.u32 %v765, 7
      %v767 = vsub.s32 0, %v766
      %v768 = vrot.slane %v664, %v767
      %v769 = vlaneseq
      %v770 = vshrl.u32 %v769, 7
      %v771 = vsub.s32 0, %v770
      %v772 = vrot.slane %v665, %v771
      %v773 = vmul.f32 %v748, %v768
      %v774 = vmul.f32 %v748, %v772
      %v775 = vmul.f32 %v753, %v768
      %v776 = vmul.f32 %v753, %v772
      %v777 = vmul.f32 %v758, %v768
      %v778 = vmul.f32 %v758, %v772
      %v779 = vmul.f32 %v763, %v768
      %v780 = vmul.f32 %v763, %v772
      %781 = vset.pattern.permute.xlu0 1
      %782 = vperm.xlu0 %781, %v741
      %v783 = vpop.permute.xlu0 %782
      %785 = vset.pattern.permute.xlu0 1
      %786 = vperm.xlu0 %785, %v742
      %v787 = vpop.permute.xlu0 %786
      %789 = vset.pattern.permute.xlu0 1
      %790 = vperm.xlu0 %789, %v743
      %v791 = vpop.permute.xlu0 %790
      %793 = vset.pattern.permute.xlu0 1
      %794 = vperm.xlu0 %793, %v744
      %v795 = vpop.permute.xlu0 %794
      %v797 = vlaneseq
      %v798 = vshrl.u32 %v797, 7
      %v799 = vsub.s32 1, %v798
      %v800 = vrot.slane %v664, %v799
      %v801 = vlaneseq
      %v802 = vshrl.u32 %v801, 7
      %v803 = vsub.s32 1, %v802
      %v804 = vrot.slane %v665, %v803
      %v805 = vmul.f32 %v783, %v800
      %v806 = vmul.f32 %v783, %v804
      %v807 = vmul.f32 %v787, %v800
      %v808 = vmul.f32 %v787, %v804
      %v809 = vmul.f32 %v791, %v800
      %v810 = vmul.f32 %v791, %v804
      %v811 = vmul.f32 %v795, %v800
      %v812 = vmul.f32 %v795, %v804
      %v813 = vadd.f32 %v773, %v805
      %v814 = vadd.f32 %v774, %v806
      %v815 = vadd.f32 %v775, %v807
      %v816 = vadd.f32 %v776, %v808
      %v817 = vadd.f32 %v777, %v809
      %v818 = vadd.f32 %v778, %v810
      %v819 = vadd.f32 %v779, %v811
      %v820 = vadd.f32 %v780, %v812
      %821 = vset.pattern.permute.xlu0 2
      %822 = vperm.xlu0 %821, %v741
      %v823 = vpop.permute.xlu0 %822
      %825 = vset.pattern.permute.xlu0 2
      %826 = vperm.xlu0 %825, %v742
      %v827 = vpop.permute.xlu0 %826
      %829 = vset.pattern.permute.xlu0 2
      %830 = vperm.xlu0 %829, %v743
      %v831 = vpop.permute.xlu0 %830
      %833 = vset.pattern.permute.xlu0 2
      %834 = vperm.xlu0 %833, %v744
      %v835 = vpop.permute.xlu0 %834
      %v837 = vlaneseq
      %v838 = vshrl.u32 %v837, 7
      %v839 = vsub.s32 2, %v838
      %v840 = vrot.slane %v664, %v839
      %v841 = vlaneseq
      %v842 = vshrl.u32 %v841, 7
      %v843 = vsub.s32 2, %v842
      %v844 = vrot.slane %v665, %v843
      %v845 = vmul.f32 %v823, %v840
      %v846 = vmul.f32 %v823, %v844
      %v847 = vmul.f32 %v827, %v840
      %v848 = vmul.f32 %v827, %v844
      %v849 = vmul.f32 %v831, %v840
      %v850 = vmul.f32 %v831, %v844
      %v851 = vmul.f32 %v835, %v840
      %v852 = vmul.f32 %v835, %v844
      %v853 = vadd.f32 %v813, %v845
      %v854 = vadd.f32 %v814, %v846
      %v855 = vadd.f32 %v815, %v847
      %v856 = vadd.f32 %v816, %v848
      %v857 = vadd.f32 %v817, %v849
      %v858 = vadd.f32 %v818, %v850
      %v859 = vadd.f32 %v819, %v851
      %v860 = vadd.f32 %v820, %v852
      %861 = vset.pattern.permute.xlu0 3
      %862 = vperm.xlu0 %861, %v741
      %v863 = vpop.permute.xlu0 %862
      %865 = vset.pattern.permute.xlu0 3
      %866 = vperm.xlu0 %865, %v742
      %v867 = vpop.permute.xlu0 %866
      %869 = vset.pattern.permute.xlu0 3
      %870 = vperm.xlu0 %869, %v743
      %v871 = vpop.permute.xlu0 %870
      %873 = vset.pattern.permute.xlu0 3
      %874 = vperm.xlu0 %873, %v744
      %v875 = vpop.permute.xlu0 %874
      %v877 = vlaneseq
      %v878 = vshrl.u32 %v877, 7
      %v879 = vsub.s32 3, %v878
      %v880 = vrot.slane %v664, %v879
      %v881 = vlaneseq
      %v882 = vshrl.u32 %v881, 7
      %v883 = vsub.s32 3, %v882
      %v884 = vrot.slane %v665, %v883
      %v885 = vmul.f32 %v863, %v880
      %v886 = vmul.f32 %v863, %v884
      %v887 = vmul.f32 %v867, %v880
      %v888 = vmul.f32 %v867, %v884
      %v889 = vmul.f32 %v871, %v880
      %v890 = vmul.f32 %v871, %v884
      %v891 = vmul.f32 %v875, %v880
      %v892 = vmul.f32 %v875, %v884
      %v893 = vadd.f32 %v853, %v885
      %v894 = vadd.f32 %v854, %v886
      %v895 = vadd.f32 %v855, %v887
      %v896 = vadd.f32 %v856, %v888
      %v897 = vadd.f32 %v857, %v889
      %v898 = vadd.f32 %v858, %v890
      %v899 = vadd.f32 %v859, %v891
      %v900 = vadd.f32 %v860, %v892
      %s901 = smul.u32 %s36, 32
      %s902 = sshra.s32 %s901, 3
      %s903 = sand.u32 %s901, 7
      %s904 = smul.u32 %s902, 2
      %s905 = smul.addr %s904, 8
      %s906 = scalar_lea.vmem [#allocation2], %s905
      %907 = vst [vmem:[%s906] sm:$0xff] %v893
      %908 = vst [vmem:[%s906 + $0x8] sm:$0xff] %v894
      %909 = vst [vmem:[%s906 + $0x10] sm:$0xff] %v895
      %910 = vst [vmem:[%s906 + $0x18] sm:$0xff] %v896
      %911 = vst [vmem:[%s906 + $0x20] sm:$0xff] %v897
      %912 = vst [vmem:[%s906 + $0x28] sm:$0xff] %v898
      %913 = vst [vmem:[%s906 + $0x30] sm:$0xff] %v899
      %914 = vst [vmem:[%s906 + $0x38] sm:$0xff] %v900
      %p915 = scmp.eq.s32.totalorder %s36, 7
      // Predicated region
      $region81: #{mtr3_forward.1} parent=79 // pred_check
        %p916 = pneg %p915
      $region82: #{mtr3_forward.1} parent=79 // pred_check_branch
        %918 = sbr.rel (%p916) target = $region84
      $region83: #{mtr3_forward.1} parent=79 // pred_region
        %v919 = vld [vmem:[%s612] sm:$0xf]
        %v920 = vlaneseq
        %v921 = vshrl.u32 %v920, 7
        %v922 = vadd.s32 %v921, 8
        %v923 = vcvt.s32.f32 %v921
        %v924 = vcvt.s32.f32 %v922
        %v925 = vlaneseq
        %v926 = vshrl.u32 %v925, 7
        %v927 = vsub.s32 1, %v926
        %v928 = vrot.slane %v919, %v927
        %v929 = vsub.f32 %v923, %v928
        %v930 = vsub.f32 %v924, %v928
        %v931 = vand.u32 2147483647, %v929
        %v932 = vand.u32 2147483647, %v930
        %v933 = vsub.f32 1.0, %v931
        %v934 = vsub.f32 1.0, %v932
        %v935 = vmax.f32 %v933, 0.0
        %v936 = vmax.f32 %v934, 0.0
        %v937 = vlaneseq
        %v938 = vshrl.u32 %v937, 7
        %v939 = vsub.s32 0, %v938
        %v940 = vrot.slane %v919, %v939
        %v941 = vsub.f32 %v923, %v940
        %v942 = vsub.f32 %v924, %v940
        %v943 = vand.u32 2147483647, %v941
        %v944 = vand.u32 2147483647, %v942
        %v945 = vsub.f32 1.0, %v943
        %v946 = vsub.f32 1.0, %v944
        %v947 = vmax.f32 %v945, 0.0
        %v948 = vmax.f32 %v946, 0.0
        %v949 = vlaneseq
        %v950 = vshrl.u32 %v949, 7
        %v951 = vsub.s32 2, %v950
        %v952 = vrot.slane %v919, %v951
        %v953 = vsub.f32 %v923, %v952
        %v954 = vand.u32 2147483647, %v953
        %v955 = vsub.f32 1.0, %v954
        %v956 = vmax.f32 %v955, 0.0
        %v959 = vcombine.high %v935, %v935
        %v961 = vunpack.c.l.s4 1966171168
        %v962 = vunpack.c.0.s8 %v961
        %v963 = vlaneseq
        %v964 = vshrl.u32 %v963, 7
        %v965 = vsub.s32 %v962, %v964
        %v966 = vrot.slane %v935, %v965
        %v968 = vunpack.c.l.s4 1966171168
        %v969 = vunpack.c.0.s8 %v968
        %v970 = vlaneseq
        %v971 = vshrl.u32 %v970, 7
        %v972 = vsub.s32 %v969, %v971
        %v973 = vrot.slane %v959, %v972
        %v974 = vcombine.high %v966, %v966
        %v975 = vcombine.high %v973, %v973
        %v977 = vunpack.c.l.s4 1966171168
        %v978 = vunpack.c.0.s8 %v977
        %v979 = vlaneseq
        %v980 = vshrl.u32 %v979, 7
        %v981 = vsub.s32 %v978, %v980
        %v982 = vrot.slane %v966, %v981
        %v984 = vunpack.c.l.s4 1966171168
        %v985 = vunpack.c.0.s8 %v984
        %v986 = vlaneseq
        %v987 = vshrl.u32 %v986, 7
        %v988 = vsub.s32 %v985, %v987
        %v989 = vrot.slane %v973, %v988
        %v991 = vunpack.c.l.s4 1966171168
        %v992 = vunpack.c.0.s8 %v991
        %v993 = vlaneseq
        %v994 = vshrl.u32 %v993, 7
        %v995 = vsub.s32 %v992, %v994
        %v996 = vrot.slane %v974, %v995
        %v998 = vunpack.c.l.s4 1966171168
        %v999 = vunpack.c.0.s8 %v998
        %v1000 = vlaneseq
        %v1001 = vshrl.u32 %v1000, 7
        %v1002 = vsub.s32 %v999, %v1001
        %v1003 = vrot.slane %v975, %v1002
        %v1004 = vcombine.high %v982, %v982
        %v1005 = vcombine.high %v989, %v989
        %v1006 = vcombine.high %v996, %v996
        %v1007 = vcombine.high %v1003, %v1003
        %v1008 = vcombine.high %v936, %v936
        %v1010 = vunpack.c.l.s4 1966171168
        %v1011 = vunpack.c.0.s8 %v1010
        %v1012 = vlaneseq
        %v1013 = vshrl.u32 %v1012, 7
        %v1014 = vsub.s32 %v1011, %v1013
        %v1015 = vrot.slane %v936, %v1014
        %v1017 = vunpack.c.l.s4 1966171168
        %v1018 = vunpack.c.0.s8 %v1017
        %v1019 = vlaneseq
        %v1020 = vshrl.u32 %v1019, 7
        %v1021 = vsub.s32 %v1018, %v1020
        %v1022 = vrot.slane %v1008, %v1021
        %v1023 = vcombine.high %v1015, %v1015
        %v1024 = vcombine.high %v1022, %v1022
        %v1026 = vunpack.c.l.s4 1966171168
        %v1027 = vunpack.c.0.s8 %v1026
        %v1028 = vlaneseq
        %v1029 = vshrl.u32 %v1028, 7
        %v1030 = vsub.s32 %v1027, %v1029
        %v1031 = vrot.slane %v1015, %v1030
        %v1033 = vunpack.c.l.s4 1966171168
        %v1034 = vunpack.c.0.s8 %v1033
        %v1035 = vlaneseq
        %v1036 = vshrl.u32 %v1035, 7
        %v1037 = vsub.s32 %v1034, %v1036
        %v1038 = vrot.slane %v1022, %v1037
        %v1040 = vunpack.c.l.s4 1966171168
        %v1041 = vunpack.c.0.s8 %v1040
        %v1042 = vlaneseq
        %v1043 = vshrl.u32 %v1042, 7
        %v1044 = vsub.s32 %v1041, %v1043
        %v1045 = vrot.slane %v1023, %v1044
        %v1047 = vunpack.c.l.s4 1966171168
        %v1048 = vunpack.c.0.s8 %v1047
        %v1049 = vlaneseq
        %v1050 = vshrl.u32 %v1049, 7
        %v1051 = vsub.s32 %v1048, %v1050
        %v1052 = vrot.slane %v1024, %v1051
        %v1053 = vcombine.high %v1031, %v1031
        %v1054 = vcombine.high %v1038, %v1038
        %v1055 = vcombine.high %v1045, %v1045
        %v1056 = vcombine.high %v1052, %v1052
        %v1057 = vlaneseq
        %v1058 = vshrl.u32 %v1057, 7
        %v1059 = vsub.s32 0, %v1058
        %v1060 = vrot.slane %v982, %v1059
        %v1061 = vlaneseq
        %v1062 = vshrl.u32 %v1061, 7
        %v1063 = vsub.s32 0, %v1062
        %v1064 = vrot.slane %v996, %v1063
        %v1065 = vlaneseq
        %v1066 = vshrl.u32 %v1065, 7
        %v1067 = vsub.s32 0, %v1066
        %v1068 = vrot.slane %v1004, %v1067
        %v1069 = vlaneseq
        %v1070 = vshrl.u32 %v1069, 7
        %v1071 = vsub.s32 0, %v1070
        %v1072 = vrot.slane %v1006, %v1071
        %v1073 = vlaneseq
        %v1074 = vshrl.u32 %v1073, 7
        %v1075 = vsub.s32 0, %v1074
        %v1076 = vrot.slane %v989, %v1075
        %v1077 = vlaneseq
        %v1078 = vshrl.u32 %v1077, 7
        %v1079 = vsub.s32 0, %v1078
        %v1080 = vrot.slane %v1003, %v1079
        %v1081 = vlaneseq
        %v1082 = vshrl.u32 %v1081, 7
        %v1083 = vsub.s32 0, %v1082
        %v1084 = vrot.slane %v1005, %v1083
        %v1085 = vlaneseq
        %v1086 = vshrl.u32 %v1085, 7
        %v1087 = vsub.s32 0, %v1086
        %v1088 = vrot.slane %v1007, %v1087
        %v1089 = vlaneseq
        %v1090 = vshrl.u32 %v1089, 7
        %v1091 = vsub.s32 0, %v1090
        %v1092 = vrot.slane %v1031, %v1091
        %v1093 = vlaneseq
        %v1094 = vshrl.u32 %v1093, 7
        %v1095 = vsub.s32 0, %v1094
        %v1096 = vrot.slane %v1045, %v1095
        %v1097 = vlaneseq
        %v1098 = vshrl.u32 %v1097, 7
        %v1099 = vsub.s32 0, %v1098
        %v1100 = vrot.slane %v1053, %v1099
        %v1101 = vlaneseq
        %v1102 = vshrl.u32 %v1101, 7
        %v1103 = vsub.s32 0, %v1102
        %v1104 = vrot.slane %v1055, %v1103
        %v1105 = vlaneseq
        %v1106 = vshrl.u32 %v1105, 7
        %v1107 = vsub.s32 0, %v1106
        %v1108 = vrot.slane %v1038, %v1107
        %v1109 = vlaneseq
        %v1110 = vshrl.u32 %v1109, 7
        %v1111 = vsub.s32 0, %v1110
        %v1112 = vrot.slane %v1052, %v1111
        %v1113 = vlaneseq
        %v1114 = vshrl.u32 %v1113, 7
        %v1115 = vsub.s32 0, %v1114
        %v1116 = vrot.slane %v1054, %v1115
        %v1117 = vlaneseq
        %v1118 = vshrl.u32 %v1117, 7
        %v1119 = vsub.s32 0, %v1118
        %v1120 = vrot.slane %v1056, %v1119
        %v1137 = vmul.f32 %v1060, %v947
        %v1138 = vmul.f32 %v1060, %v948
        %v1139 = vmul.f32 %v1064, %v947
        %v1140 = vmul.f32 %v1064, %v948
        %v1141 = vmul.f32 %v1068, %v947
        %v1142 = vmul.f32 %v1068, %v948
        %v1143 = vmul.f32 %v1072, %v947
        %v1144 = vmul.f32 %v1072, %v948
        %v1145 = vmul.f32 %v1076, %v947
        %v1146 = vmul.f32 %v1076, %v948
        %v1147 = vmul.f32 %v1080, %v947
        %v1148 = vmul.f32 %v1080, %v948
        %v1149 = vmul.f32 %v1084, %v947
        %v1150 = vmul.f32 %v1084, %v948
        %v1151 = vmul.f32 %v1088, %v947
        %v1152 = vmul.f32 %v1088, %v948
        %v1153 = vmul.f32 %v1092, %v947
        %v1154 = vmul.f32 %v1092, %v948
        %v1155 = vmul.f32 %v1096, %v947
        %v1156 = vmul.f32 %v1096, %v948
        %v1157 = vmul.f32 %v1100, %v947
        %v1158 = vmul.f32 %v1100, %v948
        %v1159 = vmul.f32 %v1104, %v947
        %v1160 = vmul.f32 %v1104, %v948
        %v1161 = vmul.f32 %v1108, %v947
        %v1162 = vmul.f32 %v1108, %v948
        %v1163 = vmul.f32 %v1112, %v947
        %v1164 = vmul.f32 %v1112, %v948
        %v1165 = vmul.f32 %v1116, %v947
        %v1166 = vmul.f32 %v1116, %v948
        %v1167 = vmul.f32 %v1120, %v947
        %v1168 = vmul.f32 %v1120, %v948
        %v1169 = vld [vmem:[#allocation2] sm:$0xff]
        %v1170 = vld [vmem:[#allocation2 + $0x8] sm:$0xff]
        %v1171 = vld [vmem:[#allocation2 + $0x10] sm:$0xff]
        %v1172 = vld [vmem:[#allocation2 + $0x18] sm:$0xff]
        %v1173 = vld [vmem:[#allocation2 + $0x20] sm:$0xff]
        %v1174 = vld [vmem:[#allocation2 + $0x28] sm:$0xff]
        %v1175 = vld [vmem:[#allocation2 + $0x30] sm:$0xff]
        %v1176 = vld [vmem:[#allocation2 + $0x38] sm:$0xff]
        %v1177 = vld [vmem:[#allocation2 + $0x40] sm:$0xff]
        %v1178 = vld [vmem:[#allocation2 + $0x48] sm:$0xff]
        %v1179 = vld [vmem:[#allocation2 + $0x50] sm:$0xff]
        %v1180 = vld [vmem:[#allocation2 + $0x58] sm:$0xff]
        %v1181 = vld [vmem:[#allocation2 + $0x60] sm:$0xff]
        %v1182 = vld [vmem:[#allocation2 + $0x68] sm:$0xff]
        %v1183 = vld [vmem:[#allocation2 + $0x70] sm:$0xff]
        %v1184 = vld [vmem:[#allocation2 + $0x78] sm:$0xff]
        %v1185 = vld [vmem:[#allocation2 + $0x80] sm:$0xff]
        %v1186 = vld [vmem:[#allocation2 + $0x88] sm:$0xff]
        %v1187 = vld [vmem:[#allocation2 + $0x90] sm:$0xff]
        %v1188 = vld [vmem:[#allocation2 + $0x98] sm:$0xff]
        %v1189 = vld [vmem:[#allocation2 + $0xa0] sm:$0xff]
        %v1190 = vld [vmem:[#allocation2 + $0xa8] sm:$0xff]
        %v1191 = vld [vmem:[#allocation2 + $0xb0] sm:$0xff]
        %v1192 = vld [vmem:[#allocation2 + $0xb8] sm:$0xff]
        %v1193 = vld [vmem:[#allocation2 + $0xc0] sm:$0xff]
        %v1194 = vld [vmem:[#allocation2 + $0xc8] sm:$0xff]
        %v1195 = vld [vmem:[#allocation2 + $0xd0] sm:$0xff]
        %v1196 = vld [vmem:[#allocation2 + $0xd8] sm:$0xff]
        %v1197 = vld [vmem:[#allocation2 + $0xe0] sm:$0xff]
        %v1198 = vld [vmem:[#allocation2 + $0xe8] sm:$0xff]
        %v1199 = vld [vmem:[#allocation2 + $0xf0] sm:$0xff]
        %v1200 = vld [vmem:[#allocation2 + $0xf8] sm:$0xff]
        %v1201 = vld [vmem:[#allocation2 + $0x100] sm:$0xff]
        %v1202 = vld [vmem:[#allocation2 + $0x108] sm:$0xff]
        %v1203 = vld [vmem:[#allocation2 + $0x110] sm:$0xff]
        %v1204 = vld [vmem:[#allocation2 + $0x118] sm:$0xff]
        %v1205 = vld [vmem:[#allocation2 + $0x120] sm:$0xff]
        %v1206 = vld [vmem:[#allocation2 + $0x128] sm:$0xff]
        %v1207 = vld [vmem:[#allocation2 + $0x130] sm:$0xff]
        %v1208 = vld [vmem:[#allocation2 + $0x138] sm:$0xff]
        %v1209 = vld [vmem:[#allocation2 + $0x140] sm:$0xff]
        %v1210 = vld [vmem:[#allocation2 + $0x148] sm:$0xff]
        %v1211 = vld [vmem:[#allocation2 + $0x150] sm:$0xff]
        %v1212 = vld [vmem:[#allocation2 + $0x158] sm:$0xff]
        %v1213 = vld [vmem:[#allocation2 + $0x160] sm:$0xff]
        %v1214 = vld [vmem:[#allocation2 + $0x168] sm:$0xff]
        %v1215 = vld [vmem:[#allocation2 + $0x170] sm:$0xff]
        %v1216 = vld [vmem:[#allocation2 + $0x178] sm:$0xff]
        %v1217 = vld [vmem:[#allocation2 + $0x180] sm:$0xff]
        %v1218 = vld [vmem:[#allocation2 + $0x188] sm:$0xff]
        %v1219 = vld [vmem:[#allocation2 + $0x190] sm:$0xff]
        %v1220 = vld [vmem:[#allocation2 + $0x198] sm:$0xff]
        %v1221 = vld [vmem:[#allocation2 + $0x1a0] sm:$0xff]
        %v1222 = vld [vmem:[#allocation2 + $0x1a8] sm:$0xff]
        %v1223 = vld [vmem:[#allocation2 + $0x1b0] sm:$0xff]
        %v1224 = vld [vmem:[#allocation2 + $0x1b8] sm:$0xff]
        %v1225 = vld [vmem:[#allocation2 + $0x1c0] sm:$0xff]
        %v1226 = vld [vmem:[#allocation2 + $0x1c8] sm:$0xff]
        %v1227 = vld [vmem:[#allocation2 + $0x1d0] sm:$0xff]
        %v1228 = vld [vmem:[#allocation2 + $0x1d8] sm:$0xff]
        %v1229 = vld [vmem:[#allocation2 + $0x1e0] sm:$0xff]
        %v1230 = vld [vmem:[#allocation2 + $0x1e8] sm:$0xff]
        %v1231 = vld [vmem:[#allocation2 + $0x1f0] sm:$0xff]
        %v1232 = vld [vmem:[#allocation2 + $0x1f8] sm:$0xff]
        %1233 = vmatprep.subr.mxu0 0.0
        %1234 = vmatpush1.msra.mxu0 %v1137
        %1235 = vmatprep.subr.mxu0 0.0
        %1236 = vmatpush1.msra.mxu0 %v1138
        %1237 = vmatprep.subr.mxu0 0.0
        %1238 = vmatpush1.msra.mxu0 %v1139
        %1239 = vmatprep.subr.mxu0 0.0
        %1240 = vmatpush1.msra.mxu0 %v1140
        %1241 = vmatprep.subr.mxu0 0.0
        %1242 = vmatpush1.msra.mxu0 %v1141
        %1243 = vmatprep.subr.mxu0 0.0
        %1244 = vmatpush1.msra.mxu0 %v1142
        %1245 = vmatprep.subr.mxu0 0.0
        %1246 = vmatpush1.msra.mxu0 %v1143
        %1247 = vmatprep.subr.mxu0 0.0
        %1248 = vmatpush1.msra.mxu0 %v1144
        %1249 = vmatprep.subr.mxu0 0.0
        %1250 = vmatpush1.msra.mxu0 %v1145
        %1251 = vmatprep.subr.mxu0 0.0
        %1252 = vmatpush1.msra.mxu0 %v1146
        %1253 = vmatprep.subr.mxu0 0.0
        %1254 = vmatpush1.msra.mxu0 %v1147
        %1255 = vmatprep.subr.mxu0 0.0
        %1256 = vmatpush1.msra.mxu0 %v1148
        %1257 = vmatprep.subr.mxu0 0.0
        %1258 = vmatpush1.msra.mxu0 %v1149
        %1259 = vmatprep.subr.mxu0 0.0
        %1260 = vmatpush1.msra.mxu0 %v1150
        %1261 = vmatprep.subr.mxu0 0.0
        %1262 = vmatpush1.msra.mxu0 %v1151
        %1263 = vmatprep.subr.mxu0 0.0
        %1264 = vmatpush1.msra.mxu0 %v1152
        %1265 = vmatprep.subr.mxu0 0.0
        %1266 = vmatpush1.msra.mxu0 %v1153
        %1267 = vmatprep.subr.mxu0 0.0
        %1268 = vmatpush1.msra.mxu0 %v1154
        %1269 = vmatprep.subr.mxu0 0.0
        %1270 = vmatpush1.msra.mxu0 %v1155
        %1271 = vmatprep.subr.mxu0 0.0
        %1272 = vmatpush1.msra.mxu0 %v1156
        %1273 = vmatprep.subr.mxu0 0.0
        %1274 = vmatpush1.msra.mxu0 %v1157
        %1275 = vmatprep.subr.mxu0 0.0
        %1276 = vmatpush1.msra.mxu0 %v1158
        %1277 = vmatprep.subr.mxu0 0.0
        %1278 = vmatpush1.msra.mxu0 %v1159
        %1279 = vmatprep.subr.mxu0 0.0
        %1280 = vmatpush1.msra.mxu0 %v1160
        %1281 = vmatprep.subr.mxu0 0.0
        %1282 = vmatpush1.msra.mxu0 %v1161
        %1283 = vmatprep.subr.mxu0 0.0
        %1284 = vmatpush1.msra.mxu0 %v1162
        %1285 = vmatprep.subr.mxu0 0.0
        %1286 = vmatpush1.msra.mxu0 %v1163
        %1287 = vmatprep.subr.mxu0 0.0
        %1288 = vmatpush1.msra.mxu0 %v1164
        %1289 = vmatprep.subr.mxu0 0.0
        %1290 = vmatpush1.msra.mxu0 %v1165
        %1291 = vmatprep.subr.mxu0 0.0
        %1292 = vmatpush1.msra.mxu0 %v1166
        %1293 = vmatprep.subr.mxu0 0.0
        %1294 = vmatpush1.msra.mxu0 %v1167
        %1295 = vmatprep.subr.mxu0 0.0
        %1296 = vmatpush1.msra.mxu0 %v1168
        %1297 = vmatprep.mubr.f32.mxu0 %v1170
        %1298 = vmatmul.mubr.f32.gmra.mrb[0].mxu0 %v1169
        %v1299 = vpop.f32.mrb[0].mxu0
        %v1300 = vadd.f32 0.0, %v1299
        %v1301 = vpop.f32.mrb[0].mxu0
        %1302 = vmatprep.mubr.f32.mxu0 %v1172
        %1303 = vmatmul.mubr.f32.gmra.mrb[0].mxu0 %v1171
        %v1304 = vpop.f32.mrb[0].mxu0
        %v1305 = vadd.f32 0.0, %v1304
        %v1306 = vpop.f32.mrb[0].mxu0
        %1307 = vmatprep.mubr.f32.mxu0 %v1174
        %1308 = vmatmul.mubr.f32.gmra.mrb[0].mxu0 %v1173
        %v1309 = vpop.f32.mrb[0].mxu0
        %v1310 = vadd.f32 0.0, %v1309
        %v1311 = vpop.f32.mrb[0].mxu0
        %1312 = vmatprep.mubr.f32.mxu0 %v1176
        %1313 = vmatmul.mubr.f32.gmra.mrb[0].mxu0 %v1175
        %v1314 = vpop.f32.mrb[0].mxu0
        %v1315 = vadd.f32 0.0, %v1314
        %v1316 = vpop.f32.mrb[0].mxu0
        %1317 = vmatprep.mubr.f32.mxu0 %v1178
        %1318 = vmatmul.mubr.f32.gmra.mrb[0].mxu0 %v1177
        %v1319 = vpop.f32.mrb[0].mxu0
        %v1320 = vadd.f32 0.0, %v1319
        %v1321 = vpop.f32.mrb[0].mxu0
        %1322 = vmatprep.mubr.f32.mxu0 %v1180
        %1323 = vmatmul.mubr.f32.gmra.mrb[0].mxu0 %v1179
        %v1324 = vpop.f32.mrb[0].mxu0
        %v1325 = vadd.f32 0.0, %v1324
        %v1326 = vpop.f32.mrb[0].mxu0
        %1327 = vmatprep.mubr.f32.mxu0 %v1182
        %1328 = vmatmul.mubr.f32.gmra.mrb[0].mxu0 %v1181
        %v1329 = vpop.f32.mrb[0].mxu0
        %v1330 = vadd.f32 0.0, %v1329
        %v1331 = vpop.f32.mrb[0].mxu0
        %1332 = vmatprep.mubr.f32.mxu0 %v1184
        %1333 = vmatmul.mubr.f32.gmra.mrb[0].mxu0 %v1183
        %v1334 = vpop.f32.mrb[0].mxu0
        %v1335 = vadd.f32 0.0, %v1334
        %v1336 = vpop.f32.mrb[0].mxu0
        %1337 = vmatprep.mubr.f32.mxu0 %v1186
        %1338 = vmatmul.mubr.f32.gmra.mrb[0].mxu0 %v1185
        %v1339 = vpop.f32.mrb[0].mxu0
        %v1340 = vadd.f32 0.0, %v1339
        %v1341 = vpop.f32.mrb[0].mxu0
        %1342 = vmatprep.mubr.f32.mxu0 %v1188
        %1343 = vmatmul.mubr.f32.gmra.mrb[0].mxu0 %v1187
        %v1344 = vpop.f32.mrb[0].mxu0
        %v1345 = vadd.f32 0.0, %v1344
        %v1346 = vpop.f32.mrb[0].mxu0
        %1347 = vmatprep.mubr.f32.mxu0 %v1190
        %1348 = vmatmul.mubr.f32.gmra.mrb[0].mxu0 %v1189
        %v1349 = vpop.f32.mrb[0].mxu0
        %v1350 = vadd.f32 0.0, %v1349
        %v1351 = vpop.f32.mrb[0].mxu0
        %1352 = vmatprep.mubr.f32.mxu0 %v1192
        %1353 = vmatmul.mubr.f32.gmra.mrb[0].mxu0 %v1191
        %v1354 = vpop.f32.mrb[0].mxu0
        %v1355 = vadd.f32 0.0, %v1354
        %v1356 = vpop.f32.mrb[0].mxu0
        %1357 = vmatprep.mubr.f32.mxu0 %v1194
        %1358 = vmatmul.mubr.f32.gmra.mrb[0].mxu0 %v1193
        %v1359 = vpop.f32.mrb[0].mxu0
        %v1360 = vadd.f32 0.0, %v1359
        %v1361 = vpop.f32.mrb[0].mxu0
        %1362 = vmatprep.mubr.f32.mxu0 %v1196
        %1363 = vmatmul.mubr.f32.gmra.mrb[0].mxu0 %v1195
        %v1364 = vpop.f32.mrb[0].mxu0
        %v1365 = vadd.f32 0.0, %v1364
        %v1366 = vpop.f32.mrb[0].mxu0
        %1367 = vmatprep.mubr.f32.mxu0 %v1198
        %1368 = vmatmul.mubr.f32.gmra.mrb[0].mxu0 %v1197
        %v1369 = vpop.f32.mrb[0].mxu0
        %v1370 = vadd.f32 0.0, %v1369
        %v1371 = vpop.f32.mrb[0].mxu0
        %1372 = vmatprep.mubr.f32.mxu0 %v1200
        %1373 = vmatmul.mubr.f32.gmra.mrb[0].mxu0 %v1199
        %v1374 = vpop.f32.mrb[0].mxu0
        %v1375 = vadd.f32 0.0, %v1374
        %v1376 = vpop.f32.mrb[0].mxu0
        %1377 = vmatprep.mubr.f32.mxu0 %v1202
        %1378 = vmatmul.mubr.f32.gmra.mrb[0].mxu0 %v1201
        %v1379 = vpop.f32.mrb[0].mxu0
        %v1380 = vadd.f32 0.0, %v1379
        %v1381 = vpop.f32.mrb[0].mxu0
        %1382 = vmatprep.mubr.f32.mxu0 %v1204
        %1383 = vmatmul.mubr.f32.gmra.mrb[0].mxu0 %v1203
        %v1384 = vpop.f32.mrb[0].mxu0
        %v1385 = vadd.f32 0.0, %v1384
        %v1386 = vpop.f32.mrb[0].mxu0
        %1387 = vmatprep.mubr.f32.mxu0 %v1206
        %1388 = vmatmul.mubr.f32.gmra.mrb[0].mxu0 %v1205
        %v1389 = vpop.f32.mrb[0].mxu0
        %v1390 = vadd.f32 0.0, %v1389
        %v1391 = vpop.f32.mrb[0].mxu0
        %1392 = vmatprep.mubr.f32.mxu0 %v1208
        %1393 = vmatmul.mubr.f32.gmra.mrb[0].mxu0 %v1207
        %v1394 = vpop.f32.mrb[0].mxu0
        %v1395 = vadd.f32 0.0, %v1394
        %v1396 = vpop.f32.mrb[0].mxu0
        %1397 = vmatprep.mubr.f32.mxu0 %v1210
        %1398 = vmatmul.mubr.f32.gmra.mrb[0].mxu0 %v1209
        %v1399 = vpop.f32.mrb[0].mxu0
        %v1400 = vadd.f32 0.0, %v1399
        %v1401 = vpop.f32.mrb[0].mxu0
        %1402 = vmatprep.mubr.f32.mxu0 %v1212
        %1403 = vmatmul.mubr.f32.gmra.mrb[0].mxu0 %v1211
        %v1404 = vpop.f32.mrb[0].mxu0
        %v1405 = vadd.f32 0.0, %v1404
        %v1406 = vpop.f32.mrb[0].mxu0
        %1407 = vmatprep.mubr.f32.mxu0 %v1214
        %1408 = vmatmul.mubr.f32.gmra.mrb[0].mxu0 %v1213
        %v1409 = vpop.f32.mrb[0].mxu0
        %v1410 = vadd.f32 0.0, %v1409
        %v1411 = vpop.f32.mrb[0].mxu0
        %1412 = vmatprep.mubr.f32.mxu0 %v1216
        %1413 = vmatmul.mubr.f32.gmra.mrb[0].mxu0 %v1215
        %v1414 = vpop.f32.mrb[0].mxu0
        %v1415 = vadd.f32 0.0, %v1414
        %v1416 = vpop.f32.mrb[0].mxu0
        %1417 = vmatprep.mubr.f32.mxu0 %v1218
        %1418 = vmatmul.mubr.f32.gmra.mrb[0].mxu0 %v1217
        %v1419 = vpop.f32.mrb[0].mxu0
        %v1420 = vadd.f32 0.0, %v1419
        %v1421 = vpop.f32.mrb[0].mxu0
        %1422 = vmatprep.mubr.f32.mxu0 %v1220
        %1423 = vmatmul.mubr.f32.gmra.mrb[0].mxu0 %v1219
        %v1424 = vpop.f32.mrb[0].mxu0
        %v1425 = vadd.f32 0.0, %v1424
        %v1426 = vpop.f32.mrb[0].mxu0
        %1427 = vmatprep.mubr.f32.mxu0 %v1222
        %1428 = vmatmul.mubr.f32.gmra.mrb[0].mxu0 %v1221
        %v1429 = vpop.f32.mrb[0].mxu0
        %v1430 = vadd.f32 0.0, %v1429
        %v1431 = vpop.f32.mrb[0].mxu0
        %1432 = vmatprep.mubr.f32.mxu0 %v1224
        %1433 = vmatmul.mubr.f32.gmra.mrb[0].mxu0 %v1223
        %v1434 = vpop.f32.mrb[0].mxu0
        %v1435 = vadd.f32 0.0, %v1434
        %v1436 = vpop.f32.mrb[0].mxu0
        %1437 = vmatprep.mubr.f32.mxu0 %v1226
        %1438 = vmatmul.mubr.f32.gmra.mrb[0].mxu0 %v1225
        %v1439 = vpop.f32.mrb[0].mxu0
        %v1440 = vadd.f32 0.0, %v1439
        %v1441 = vpop.f32.mrb[0].mxu0
        %1442 = vmatprep.mubr.f32.mxu0 %v1228
        %1443 = vmatmul.mubr.f32.gmra.mrb[0].mxu0 %v1227
        %v1444 = vpop.f32.mrb[0].mxu0
        %v1445 = vadd.f32 0.0, %v1444
        %v1446 = vpop.f32.mrb[0].mxu0
        %1447 = vmatprep.mubr.f32.mxu0 %v1230
        %1448 = vmatmul.mubr.f32.gmra.mrb[0].mxu0 %v1229
        %v1449 = vpop.f32.mrb[0].mxu0
        %v1450 = vadd.f32 0.0, %v1449
        %v1451 = vpop.f32.mrb[0].mxu0
        %1452 = vmatprep.mubr.f32.mxu0 %v1232
        %1453 = vmatmul.mubr.f32.gmra.mrb[0].mxu0 %v1231
        %v1454 = vpop.f32.mrb[0].mxu0
        %v1455 = vadd.f32 0.0, %v1454
        %v1456 = vpop.f32.mrb[0].mxu0
        %1457 = vdwg.mxu0
        %v1458 = vlaneseq
        %v1459 = vshrl.u32 %v1458, 7
        %v1460 = vsub.s32 0, %v1459
        %v1461 = vrot.slane %v956, %v1460
        %v1462 = vmul.f32 %v1461, %v1300
        %v1463 = vmul.f32 %v1461, %v1305
        %v1464 = vmul.f32 %v1461, %v1310
        %v1465 = vmul.f32 %v1461, %v1315
        %v1466 = vlaneseq
        %v1467 = vshrl.u32 %v1466, 7
        %v1468 = vsub.s32 1, %v1467
        %v1469 = vrot.slane %v956, %v1468
        %v1470 = vmul.f32 %v1469, %v1320
        %v1471 = vmul.f32 %v1469, %v1325
        %v1472 = vmul.f32 %v1469, %v1330
        %v1473 = vmul.f32 %v1469, %v1335
        %v1474 = vadd.f32 %v1462, %v1470
        %v1475 = vadd.f32 %v1463, %v1471
        %v1476 = vadd.f32 %v1464, %v1472
        %v1477 = vadd.f32 %v1465, %v1473
        %v1478 = vlaneseq
        %v1479 = vshrl.u32 %v1478, 7
        %v1480 = vsub.s32 2, %v1479
        %v1481 = vrot.slane %v956, %v1480
        %v1482 = vmul.f32 %v1481, %v1340
        %v1483 = vmul.f32 %v1481, %v1345
        %v1484 = vmul.f32 %v1481, %v1350
        %v1485 = vmul.f32 %v1481, %v1355
        %v1486 = vadd.f32 %v1474, %v1482
        %v1487 = vadd.f32 %v1475, %v1483
        %v1488 = vadd.f32 %v1476, %v1484
        %v1489 = vadd.f32 %v1477, %v1485
        %v1490 = vlaneseq
        %v1491 = vshrl.u32 %v1490, 7
        %v1492 = vsub.s32 3, %v1491
        %v1493 = vrot.slane %v956, %v1492
        %v1494 = vmul.f32 %v1493, %v1360
        %v1495 = vmul.f32 %v1493, %v1365
        %v1496 = vmul.f32 %v1493, %v1370
        %v1497 = vmul.f32 %v1493, %v1375
        %v1498 = vadd.f32 %v1486, %v1494
        %v1499 = vadd.f32 %v1487, %v1495
        %v1500 = vadd.f32 %v1488, %v1496
        %v1501 = vadd.f32 %v1489, %v1497
        %v1502 = vlaneseq
        %v1503 = vshrl.u32 %v1502, 7
        %v1504 = vsub.s32 4, %v1503
        %v1505 = vrot.slane %v956, %v1504
        %v1506 = vmul.f32 %v1505, %v1380
        %v1507 = vmul.f32 %v1505, %v1385
        %v1508 = vmul.f32 %v1505, %v1390
        %v1509 = vmul.f32 %v1505, %v1395
        %v1510 = vadd.f32 %v1498, %v1506
        %v1511 = vadd.f32 %v1499, %v1507
        %v1512 = vadd.f32 %v1500, %v1508
        %v1513 = vadd.f32 %v1501, %v1509
        %v1514 = vlaneseq
        %v1515 = vshrl.u32 %v1514, 7
        %v1516 = vsub.s32 5, %v1515
        %v1517 = vrot.slane %v956, %v1516
        %v1518 = vmul.f32 %v1517, %v1400
        %v1519 = vmul.f32 %v1517, %v1405
        %v1520 = vmul.f32 %v1517, %v1410
        %v1521 = vmul.f32 %v1517, %v1415
        %v1522 = vadd.f32 %v1510, %v1518
        %v1523 = vadd.f32 %v1511, %v1519
        %v1524 = vadd.f32 %v1512, %v1520
        %v1525 = vadd.f32 %v1513, %v1521
        %v1526 = vlaneseq
        %v1527 = vshrl.u32 %v1526, 7
        %v1528 = vsub.s32 6, %v1527
        %v1529 = vrot.slane %v956, %v1528
        %v1530 = vmul.f32 %v1529, %v1420
        %v1531 = vmul.f32 %v1529, %v1425
        %v1532 = vmul.f32 %v1529, %v1430
        %v1533 = vmul.f32 %v1529, %v1435
        %v1534 = vadd.f32 %v1522, %v1530
        %v1535 = vadd.f32 %v1523, %v1531
        %v1536 = vadd.f32 %v1524, %v1532
        %v1537 = vadd.f32 %v1525, %v1533
        %v1538 = vlaneseq
        %v1539 = vshrl.u32 %v1538, 7
        %v1540 = vsub.s32 7, %v1539
        %v1541 = vrot.slane %v956, %v1540
        %v1542 = vmul.f32 %v1541, %v1440
        %v1543 = vmul.f32 %v1541, %v1445
        %v1544 = vmul.f32 %v1541, %v1450
        %v1545 = vmul.f32 %v1541, %v1455
        %v1546 = vadd.f32 %v1534, %v1542
        %v1547 = vadd.f32 %v1535, %v1543
        %v1548 = vadd.f32 %v1536, %v1544
        %v1549 = vadd.f32 %v1537, %v1545
        %v1550 = vld [vmem:[%s7] sm:$0xff]
        %v1551 = vld [vmem:[%s7 + $0x8] sm:$0xff]
        %v1552 = vld [vmem:[%s7 + $0x10] sm:$0xff]
        %v1553 = vld [vmem:[%s7 + $0x18] sm:$0xff]
        %1555 = vset.pattern.permute.xlu0 0
        %1556 = vperm.xlu0 %1555, %v1550
        %v1557 = vpop.permute.xlu0 %1556
        %1560 = vset.pattern.permute.xlu0 0
        %1561 = vperm.xlu0 %1560, %v1551
        %v1562 = vpop.permute.xlu0 %1561
        %1565 = vset.pattern.permute.xlu0 0
        %1566 = vperm.xlu0 %1565, %v1552
        %v1567 = vpop.permute.xlu0 %1566
        %1570 = vset.pattern.permute.xlu0 0
        %1571 = vperm.xlu0 %1570, %v1553
        %v1572 = vpop.permute.xlu0 %1571
        %v1574 = vadd.f32 %v1546, %v1557
        %v1575 = vadd.f32 %v1547, %v1562
        %v1576 = vadd.f32 %v1548, %v1567
        %v1577 = vadd.f32 %v1549, %v1572
        %v1578 = vmax.f32 %v1574, 0.0
        %v1579 = vmax.f32 %v1575, 0.0
        %v1580 = vmax.f32 %v1576, 0.0
        %v1581 = vmax.f32 %v1577, 0.0
        %vm1582 = vcmp.lt.f32.partialorder %v919, 0.0
        %v1583 = vsel %vm1582, 1, 0
        %v1584 = vlaneseq
        %v1585 = vshrl.u32 %v1584, 7
        %v1586 = vsub.s32 3, %v1585
        %v1587 = vrot.slane %v1583, %v1586
        %vm1588 = vcmp.eq.s32.totalorder %v1587, 1
        %v1589 = vsel %vm1588, 0.0, %v1578
        %v1590 = vsel %vm1588, 0.0, %v1579
        %v1591 = vsel %vm1588, 0.0, %v1580
        %v1592 = vsel %vm1588, 0.0, %v1581
        %v1593 = vld [vmem:[%s8] sm:$0xff]
        %v1594 = vld [vmem:[%s8 + $0x8] sm:$0xff]
        %v1595 = vld [vmem:[%s8 + $0x10] sm:$0xff]
        %v1596 = vld [vmem:[%s8 + $0x18] sm:$0xff]
        %v1597 = vld [vmem:[%s9] sm:$0xff]
        %v1598 = vld [vmem:[%s9 + $0x8] sm:$0xff]
        %v1599 = vld [vmem:[%s9 + $0x10] sm:$0xff]
        %v1600 = vld [vmem:[%s9 + $0x18] sm:$0xff]
        %1602 = vset.pattern.permute.xlu0 0
        %1603 = vperm.xlu0 %1602, %v1597
        %v1604 = vpop.permute.xlu0 %1603
        %1607 = vset.pattern.permute.xlu0 0
        %1608 = vperm.xlu0 %1607, %v1598
        %v1609 = vpop.permute.xlu0 %1608
        %1612 = vset.pattern.permute.xlu0 0
        %1613 = vperm.xlu0 %1612, %v1599
        %v1614 = vpop.permute.xlu0 %1613
        %1617 = vset.pattern.permute.xlu0 0
        %1618 = vperm.xlu0 %1617, %v1600
        %v1619 = vpop.permute.xlu0 %1618
        %vm1621 = vcmask 261120
        %v1623 = vsel %vm1621, %v1593, 0
        %v1626 = vsel %vm1621, %v1594, 0
        %v1629 = vsel %vm1621, %v1595, 0
        %v1632 = vsel %vm1621, %v1596, 0
        %1634 = vmatprep.subr.mxu0 0.0
        %1635 = vmatpush1.msra.mxu0 %v1589
        %1636 = vmatprep.subr.mxu0 0.0
        %1637 = vmatpush1.msra.mxu0 %v1590
        %1638 = vmatprep.subr.mxu0 0.0
        %1639 = vmatpush1.msra.mxu0 %v1591
        %1640 = vmatprep.subr.mxu0 0.0
        %1641 = vmatpush1.msra.mxu0 %v1592
        %1642 = vmatprep.subr.mxu0 0.0
        %1643 = vmatpush1.msra.mxu0 0.0
        %1644 = vmatprep.subr.mxu0 0.0
        %1645 = vmatpush1.msra.mxu0 0.0
        %1646 = vmatprep.subr.mxu0 0.0
        %1647 = vmatpush1.msra.mxu0 0.0
        %1648 = vmatprep.subr.mxu0 0.0
        %1649 = vmatpush1.msra.mxu0 0.0
        %1650 = vmatprep.subr.mxu0 0.0
        %1651 = vmatpush1.msra.mxu0 0.0
        %1652 = vmatprep.subr.mxu0 0.0
        %1653 = vmatpush1.msra.mxu0 0.0
        %1654 = vmatprep.subr.mxu0 0.0
        %1655 = vmatpush1.msra.mxu0 0.0
        %1656 = vmatprep.subr.mxu0 0.0
        %1657 = vmatpush1.msra.mxu0 0.0
        %1658 = vmatprep.subr.mxu0 0.0
        %1659 = vmatpush1.msra.mxu0 0.0
        %1660 = vmatprep.subr.mxu0 0.0
        %1661 = vmatpush1.msra.mxu0 0.0
        %1662 = vmatprep.subr.mxu0 0.0
        %1663 = vmatpush1.msra.mxu0 0.0
        %1664 = vmatprep.subr.mxu0 0.0
        %1665 = vmatpush1.msra.mxu0 0.0
        %1666 = vmatprep.subr.mxu0 0.0
        %1667 = vmatpush1.msra.mxu0 0.0
        %1668 = vmatprep.subr.mxu0 0.0
        %1669 = vmatpush1.msra.mxu0 0.0
        %1670 = vmatprep.subr.mxu0 0.0
        %1671 = vmatpush1.msra.mxu0 0.0
        %1672 = vmatprep.subr.mxu0 0.0
        %1673 = vmatpush1.msra.mxu0 0.0
        %1674 = vmatprep.subr.mxu0 0.0
        %1675 = vmatpush1.msra.mxu0 0.0
        %1676 = vmatprep.subr.mxu0 0.0
        %1677 = vmatpush1.msra.mxu0 0.0
        %1678 = vmatprep.subr.mxu0 0.0
        %1679 = vmatpush1.msra.mxu0 0.0
        %1680 = vmatprep.subr.mxu0 0.0
        %1681 = vmatpush1.msra.mxu0 0.0
        %1682 = vmatprep.subr.mxu0 0.0
        %1683 = vmatpush1.msra.mxu0 0.0
        %1684 = vmatprep.subr.mxu0 0.0
        %1685 = vmatpush1.msra.mxu0 0.0
        %1686 = vmatprep.subr.mxu0 0.0
        %1687 = vmatpush1.msra.mxu0 0.0
        %1688 = vmatprep.subr.mxu0 0.0
        %1689 = vmatpush1.msra.mxu0 0.0
        %1690 = vmatprep.subr.mxu0 0.0
        %1691 = vmatpush1.msra.mxu0 0.0
        %1692 = vmatprep.subr.mxu0 0.0
        %1693 = vmatpush1.msra.mxu0 0.0
        %1694 = vmatprep.subr.mxu0 0.0
        %1695 = vmatpush1.msra.mxu0 0.0
        %1696 = vmatprep.subr.mxu0 0.0
        %1697 = vmatpush1.msra.mxu0 0.0
        %1698 = vmatprep.mubr.f32.mxu0 0.0
        %1699 = vmatmul.mubr.f32.gmra.mrb[0].mxu0 %v1623
        %v1700 = vpop.f32.mrb[0].mxu0
        %v1701 = vadd.f32 %v1604, %v1700
        %v1702 = vpop.f32.mrb[0].mxu0
        %1703 = vmatprep.mubr.f32.mxu0 0.0
        %1704 = vmatmul.mubr.f32.gmra.mrb[0].mxu0 %v1626
        %v1705 = vpop.f32.mrb[0].mxu0
        %v1706 = vadd.f32 %v1609, %v1705
        %v1707 = vpop.f32.mrb[0].mxu0
        %1708 = vmatprep.mubr.f32.mxu0 0.0
        %1709 = vmatmul.mubr.f32.gmra.mrb[0].mxu0 %v1629
        %v1710 = vpop.f32.mrb[0].mxu0
        %v1711 = vadd.f32 %v1614, %v1710
        %v1712 = vpop.f32.mrb[0].mxu0
        %1713 = vmatprep.mubr.f32.mxu0 0.0
        %1714 = vmatmul.mubr.f32.gmra.mrb[0].mxu0 %v1632
        %v1715 = vpop.f32.mrb[0].mxu0
        %v1716 = vadd.f32 %v1619, %v1715
        %v1717 = vpop.f32.mrb[0].mxu0
        %1718 = vdwg.mxu0
        %v1719 = vmax.f32 %v1701, 0.0
        %v1720 = vmax.f32 %v1706, 0.0
        %v1721 = vmax.f32 %v1711, 0.0
        %v1722 = vmax.f32 %v1716, 0.0
        %v1723 = vld [vmem:[%s10] sm:$0xff]
        %v1724 = vld [vmem:[%s10 + $0x8] sm:$0xff]
        %v1725 = vld [vmem:[%s10 + $0x10] sm:$0xff]
        %v1726 = vld [vmem:[%s10 + $0x18] sm:$0xff]
        %v1727 = vld [vmem:[%s11] sm:$0xff]
        %v1728 = vld [vmem:[%s11 + $0x8] sm:$0xff]
        %v1729 = vld [vmem:[%s11 + $0x10] sm:$0xff]
        %v1730 = vld [vmem:[%s11 + $0x18] sm:$0xff]
        %1732 = vset.pattern.permute.xlu0 0
        %1733 = vperm.xlu0 %1732, %v1727
        %v1734 = vpop.permute.xlu0 %1733
        %1737 = vset.pattern.permute.xlu0 0
        %1738 = vperm.xlu0 %1737, %v1728
        %v1739 = vpop.permute.xlu0 %1738
        %1742 = vset.pattern.permute.xlu0 0
        %1743 = vperm.xlu0 %1742, %v1729
        %v1744 = vpop.permute.xlu0 %1743
        %1747 = vset.pattern.permute.xlu0 0
        %1748 = vperm.xlu0 %1747, %v1730
        %v1749 = vpop.permute.xlu0 %1748
        %v1752 = vsel %vm1621, %v1723, 0
        %v1755 = vsel %vm1621, %v1724, 0
        %v1758 = vsel %vm1621, %v1725, 0
        %v1761 = vsel %vm1621, %v1726, 0
        %1763 = vmatprep.subr.mxu0 0.0
        %1764 = vmatpush1.msra.mxu0 %v1719
        %1765 = vmatprep.subr.mxu0 0.0
        %1766 = vmatpush1.msra.mxu0 %v1720
        %1767 = vmatprep.subr.mxu0 0.0
        %1768 = vmatpush1.msra.mxu0 %v1721
        %1769 = vmatprep.subr.mxu0 0.0
        %1770 = vmatpush1.msra.mxu0 %v1722
        %1771 = vmatprep.subr.mxu0 0.0
        %1772 = vmatpush1.msra.mxu0 0.0
        %1773 = vmatprep.subr.mxu0 0.0
        %1774 = vmatpush1.msra.mxu0 0.0
        %1775 = vmatprep.subr.mxu0 0.0
        %1776 = vmatpush1.msra.mxu0 0.0
        %1777 = vmatprep.subr.mxu0 0.0
        %1778 = vmatpush1.msra.mxu0 0.0
        %1779 = vmatprep.subr.mxu0 0.0
        %1780 = vmatpush1.msra.mxu0 0.0
        %1781 = vmatprep.subr.mxu0 0.0
        %1782 = vmatpush1.msra.mxu0 0.0
        %1783 = vmatprep.subr.mxu0 0.0
        %1784 = vmatpush1.msra.mxu0 0.0
        %1785 = vmatprep.subr.mxu0 0.0
        %1786 = vmatpush1.msra.mxu0 0.0
        %1787 = vmatprep.subr.mxu0 0.0
        %1788 = vmatpush1.msra.mxu0 0.0
        %1789 = vmatprep.subr.mxu0 0.0
        %1790 = vmatpush1.msra.mxu0 0.0
        %1791 = vmatprep.subr.mxu0 0.0
        %1792 = vmatpush1.msra.mxu0 0.0
        %1793 = vmatprep.subr.mxu0 0.0
        %1794 = vmatpush1.msra.mxu0 0.0
        %1795 = vmatprep.subr.mxu0 0.0
        %1796 = vmatpush1.msra.mxu0 0.0
        %1797 = vmatprep.subr.mxu0 0.0
        %1798 = vmatpush1.msra.mxu0 0.0
        %1799 = vmatprep.subr.mxu0 0.0
        %1800 = vmatpush1.msra.mxu0 0.0
        %1801 = vmatprep.subr.mxu0 0.0
        %1802 = vmatpush1.msra.mxu0 0.0
        %1803 = vmatprep.subr.mxu0 0.0
        %1804 = vmatpush1.msra.mxu0 0.0
        %1805 = vmatprep.subr.mxu0 0.0
        %1806 = vmatpush1.msra.mxu0 0.0
        %1807 = vmatprep.subr.mxu0 0.0
        %1808 = vmatpush1.msra.mxu0 0.0
        %1809 = vmatprep.subr.mxu0 0.0
        %1810 = vmatpush1.msra.mxu0 0.0
        %1811 = vmatprep.subr.mxu0 0.0
        %1812 = vmatpush1.msra.mxu0 0.0
        %1813 = vmatprep.subr.mxu0 0.0
        %1814 = vmatpush1.msra.mxu0 0.0
        %1815 = vmatprep.subr.mxu0 0.0
        %1816 = vmatpush1.msra.mxu0 0.0
        %1817 = vmatprep.subr.mxu0 0.0
        %1818 = vmatpush1.msra.mxu0 0.0
        %1819 = vmatprep.subr.mxu0 0.0
        %1820 = vmatpush1.msra.mxu0 0.0
        %1821 = vmatprep.subr.mxu0 0.0
        %1822 = vmatpush1.msra.mxu0 0.0
        %1823 = vmatprep.subr.mxu0 0.0
        %1824 = vmatpush1.msra.mxu0 0.0
        %1825 = vmatprep.subr.mxu0 0.0
        %1826 = vmatpush1.msra.mxu0 0.0
        %1827 = vmatprep.mubr.f32.mxu0 0.0
        %1828 = vmatmul.mubr.f32.gmra.mrb[0].mxu0 %v1752
        %v1829 = vpop.f32.mrb[0].mxu0
        %v1830 = vadd.f32 %v1734, %v1829
        %v1831 = vpop.f32.mrb[0].mxu0
        %1832 = vmatprep.mubr.f32.mxu0 0.0
        %1833 = vmatmul.mubr.f32.gmra.mrb[0].mxu0 %v1755
        %v1834 = vpop.f32.mrb[0].mxu0
        %v1835 = vadd.f32 %v1739, %v1834
        %v1836 = vpop.f32.mrb[0].mxu0
        %1837 = vmatprep.mubr.f32.mxu0 0.0
        %1838 = vmatmul.mubr.f32.gmra.mrb[0].mxu0 %v1758
        %v1839 = vpop.f32.mrb[0].mxu0
        %v1840 = vadd.f32 %v1744, %v1839
        %v1841 = vpop.f32.mrb[0].mxu0
        %1842 = vmatprep.mubr.f32.mxu0 0.0
        %1843 = vmatmul.mubr.f32.gmra.mrb[0].mxu0 %v1761
        %v1844 = vpop.f32.mrb[0].mxu0
        %v1845 = vadd.f32 %v1749, %v1844
        %v1846 = vpop.f32.mrb[0].mxu0
        %1847 = vdwg.mxu0
        %v1848 = vmax.f32 %v1830, 0.0
        %v1849 = vmax.f32 %v1835, 0.0
        %v1850 = vmax.f32 %v1840, 0.0
        %v1851 = vmax.f32 %v1845, 0.0
        %v1852 = vld [vmem:[%s12] sm:$0x3f]
        %v1853 = vld [vmem:[%s13] sm:$0x3f]
        %1855 = vset.pattern.permute.xlu0 0
        %1856 = vperm.xlu0 %1855, %v1853
        %v1857 = vpop.permute.xlu0 %1856
        %v1860 = vsel %vm1621, %v1852, 0
        %1862 = vmatprep.subr.mxu0 0.0
        %1863 = vmatpush1.msra.mxu0 %v1848
        %1864 = vmatprep.subr.mxu0 0.0
        %1865 = vmatpush1.msra.mxu0 %v1849
        %1866 = vmatprep.subr.mxu0 0.0
        %1867 = vmatpush1.msra.mxu0 %v1850
        %1868 = vmatprep.subr.mxu0 0.0
        %1869 = vmatpush1.msra.mxu0 %v1851
        %1870 = vmatprep.subr.mxu0 0.0
        %1871 = vmatpush1.msra.mxu0 0.0
        %1872 = vmatprep.subr.mxu0 0.0
        %1873 = vmatpush1.msra.mxu0 0.0
        %1874 = vmatprep.subr.mxu0 0.0
        %1875 = vmatpush1.msra.mxu0 0.0
        %1876 = vmatprep.subr.mxu0 0.0
        %1877 = vmatpush1.msra.mxu0 0.0
        %1878 = vmatprep.subr.mxu0 0.0
        %1879 = vmatpush1.msra.mxu0 0.0
        %1880 = vmatprep.subr.mxu0 0.0
        %1881 = vmatpush1.msra.mxu0 0.0
        %1882 = vmatprep.subr.mxu0 0.0
        %1883 = vmatpush1.msra.mxu0 0.0
        %1884 = vmatprep.subr.mxu0 0.0
        %1885 = vmatpush1.msra.mxu0 0.0
        %1886 = vmatprep.subr.mxu0 0.0
        %1887 = vmatpush1.msra.mxu0 0.0
        %1888 = vmatprep.subr.mxu0 0.0
        %1889 = vmatpush1.msra.mxu0 0.0
        %1890 = vmatprep.subr.mxu0 0.0
        %1891 = vmatpush1.msra.mxu0 0.0
        %1892 = vmatprep.subr.mxu0 0.0
        %1893 = vmatpush1.msra.mxu0 0.0
        %1894 = vmatprep.subr.mxu0 0.0
        %1895 = vmatpush1.msra.mxu0 0.0
        %1896 = vmatprep.subr.mxu0 0.0
        %1897 = vmatpush1.msra.mxu0 0.0
        %1898 = vmatprep.subr.mxu0 0.0
        %1899 = vmatpush1.msra.mxu0 0.0
        %1900 = vmatprep.subr.mxu0 0.0
        %1901 = vmatpush1.msra.mxu0 0.0
        %1902 = vmatprep.subr.mxu0 0.0
        %1903 = vmatpush1.msra.mxu0 0.0
        %1904 = vmatprep.subr.mxu0 0.0
        %1905 = vmatpush1.msra.mxu0 0.0
        %1906 = vmatprep.subr.mxu0 0.0
        %1907 = vmatpush1.msra.mxu0 0.0
        %1908 = vmatprep.subr.mxu0 0.0
        %1909 = vmatpush1.msra.mxu0 0.0
        %1910 = vmatprep.subr.mxu0 0.0
        %1911 = vmatpush1.msra.mxu0 0.0
        %1912 = vmatprep.subr.mxu0 0.0
        %1913 = vmatpush1.msra.mxu0 0.0
        %1914 = vmatprep.subr.mxu0 0.0
        %1915 = vmatpush1.msra.mxu0 0.0
        %1916 = vmatprep.subr.mxu0 0.0
        %1917 = vmatpush1.msra.mxu0 0.0
        %1918 = vmatprep.subr.mxu0 0.0
        %1919 = vmatpush1.msra.mxu0 0.0
        %1920 = vmatprep.subr.mxu0 0.0
        %1921 = vmatpush1.msra.mxu0 0.0
        %1922 = vmatprep.subr.mxu0 0.0
        %1923 = vmatpush1.msra.mxu0 0.0
        %1924 = vmatprep.subr.mxu0 0.0
        %1925 = vmatpush1.msra.mxu0 0.0
        %1926 = vmatprep.mubr.f32.mxu0 0.0
        %1927 = vmatmul.mubr.f32.gmra.mrb[0].mxu0 %v1860
        %v1928 = vpop.f32.mrb[0].mxu0
        %v1929 = vadd.f32 %v1857, %v1928
        %v1930 = vpop.f32.mrb[0].mxu0
        %1931 = vdwg.mxu0
        %v1932 = vmul.f32 %v1929, 0.5
        %v1933 = vtanh.pop %v1932
        %v1934 = vld [vmem:[%s14] sm:$0x3f]
        %1936 = vset.pattern.permute.xlu0 0
        %1937 = vperm.xlu0 %1936, %v1934
        %v1938 = vpop.permute.xlu0 %1937
        %v1940 = vmul.f32 %v1933, %v1938
        %vm1941 = vcmask 521216
        %1942 = vst.msk [vmem:[%s635] sm:$0x3f] %vm1941, %v1940
      $region84: #{mtr3_forward.1} parent=79 // pred_fallthru
        _
      %s1943 = smul.u32 2, %s36
      %p1944 = scmp.lt.s32.totalorder %s35, 1
      %s1945 = scalar_select %p1944, %s35, 1
      %p1946 = scmp.lt.s32.totalorder %s1943, 15
      %s1947 = scalar_select %p1946, %s1943, 15
      %s1948 = smul.addr %s1945, 16
      %s1949 = sadd.s32 %s1947, %s1948
      %s1950 = smul.addr %s1949, 4
      %s1951 = scalar_lea.vmem %s15, %s1950
      %s1952 = smul.u32 2, %s36
      %p1953 = scmp.lt.s32.totalorder %s35, 1
      %s1954 = scalar_select %p1953, %s35, 1
      %p1955 = scmp.lt.s32.totalorder %s1952, 15
      %s1956 = scalar_select %p1955, %s1952, 15
      %s1957 = smul.addr %s1954, 16
      %s1958 = sadd.s32 %s1956, %s1957
      %s1959 = scalar_lea.vmem %s16, %s1958
      %p1960 = scmp.lt.s32.totalorder %s35, 1
      %s1961 = scalar_select %p1960, %s35, 1
      %s1962 = smul.addr %s1961, 8
      %s1963 = scalar_lea.vmem %s17, %s1962
      // Predicated region
      $region85: #{mtr3_forward.1} parent=79 // pred_check
        %p1964 = pneg %p390
      $region86: #{mtr3_forward.1} parent=79 // pred_check_branch
        %1966 = sbr.rel (%p1964) target = $region88
      $region87: #{mtr3_forward.1} parent=79 // pred_region
        %s1967 = smul.u32 2, %s36
      $region88: #{mtr3_forward.1} parent=79 // pred_fallthru
        _
      // Predicated region
      $region89: #{mtr3_forward.1} parent=79 // pred_check
        %p1968 = pneg %p418
      $region90: #{mtr3_forward.1} parent=79 // pred_check_branch
        %1970 = sbr.rel (%p1968) target = $region92
      $region91: #{mtr3_forward.1} parent=79 // pred_region
        %s1971 = smul.u32 2, %s36
      $region92: #{mtr3_forward.1} parent=79 // pred_fallthru
        _
      // Predicated region
      $region93: #{mtr3_forward.1} parent=79 // pred_check
        %p1972 = pneg %p444
      $region94: #{mtr3_forward.1} parent=79 // pred_check_branch
        %1974 = sbr.rel (%p1972) target = $region96
      $region95: #{mtr3_forward.1} parent=79 // pred_region
        _
      $region96: #{mtr3_forward.1} parent=79 // pred_fallthru
        _
    $region80: #{mtr3_forward.1} parent=5 // pred_fallthru
      _
    %p1975 = scmp.le.s32.totalorder 2, %s26
    // Predicated region
    $region97: #{mtr3_forward.1} parent=5 // pred_check
      %p1976 = pneg %p1975
    $region98: #{mtr3_forward.1} parent=5 // pred_check_branch
      %1978 = sbr.rel (%p1976) target = $region100
    $region99: #{mtr3_forward.1} parent=5 // pred_region
      %s1979 = ssub.s32 %s26, 2
      // Predicated region
      $region101: #{mtr3_forward.1} parent=99 // pred_check
        %p1980 = pneg %p396
      $region102: #{mtr3_forward.1} parent=99 // pred_check_branch
        %1982 = sbr.rel (%p1980) target = $region104
      $region103: #{mtr3_forward.1} parent=99 // pred_region
        %s1983 = smul.u32 2, %s38
        %p1984 = scmp.lt.s32.totalorder %s37, 1
        %s1985 = scalar_select %p1984, %s37, 1
        %p1986 = scmp.lt.s32.totalorder %s1983, 15
        %s1987 = scalar_select %p1986, %s1983, 15
        %s1988 = smul.addr %s1985, 16
        %s1989 = sadd.s32 %s1987, %s1988
        %s1990 = smul.addr %s1989, 4
        %s1991 = scalar_lea.vmem %s15, %s1990
      $region104: #{mtr3_forward.1} parent=99 // pred_fallthru
        _
      // Predicated region
      $region105: #{mtr3_forward.1} parent=99 // pred_check
        %p1992 = pneg %p424
      $region106: #{mtr3_forward.1} parent=99 // pred_check_branch
        %1994 = sbr.rel (%p1992) target = $region108
      $region107: #{mtr3_forward.1} parent=99 // pred_region
        %s1995 = smul.u32 2, %s38
        %p1996 = scmp.lt.s32.totalorder %s37, 1
        %s1997 = scalar_select %p1996, %s37, 1
        %p1998 = scmp.lt.s32.totalorder %s1995, 15
        %s1999 = scalar_select %p1998, %s1995, 15
        %s2000 = smul.addr %s1997, 16
        %s2001 = sadd.s32 %s1999, %s2000
        %s2002 = scalar_lea.vmem %s16, %s2001
      $region108: #{mtr3_forward.1} parent=99 // pred_fallthru
        _
      // Predicated region
      $region109: #{mtr3_forward.1} parent=99 // pred_check
        %p2003 = pneg %p450
      $region110: #{mtr3_forward.1} parent=99 // pred_check_branch
        %2005 = sbr.rel (%p2003) target = $region112
      $region111: #{mtr3_forward.1} parent=99 // pred_region
        %p2006 = scmp.lt.s32.totalorder %s37, 1
        %s2007 = scalar_select %p2006, %s37, 1
        %s2008 = smul.addr %s2007, 8
        %s2009 = scalar_lea.vmem %s17, %s2008
      $region112: #{mtr3_forward.1} parent=99 // pred_fallthru
        _
    $region100: #{mtr3_forward.1} parent=5 // pred_fallthru
      _
  $region6: #{mtr3_forward.1} parent=0 // loop_footer
    %s30 = sadd.s32 1, %s26
  $region7: #{mtr3_forward.1} parent=0 // loop_footer_branch
    %25 = sbr.rel target = $region3
  $region8: #{mtr3_forward.1} parent=0 // loop_exit
    _

</llo_original>
